<compile_context>
chip_gen: v7x
topology: tpu7x:2x2x1
jax: 0.10.0
libtpu: 0.0.40
codegen_flags: <defaults>
</compile_context>

<pallas_src>
import functools

import jax
import jax.numpy as jnp
import numpy as np
from jax import lax
from jax.experimental import pallas as pl
from jax.experimental.pallas import tpu as pltpu


def ta_transe_kernel(tok_ref, gtab_ref, whh_ref, he_ref, te_ref,
                     out_ref, xw_ref, *, l1_flag):
    """One batch tile, batch-on-lanes layout.

    tok_ref : [S, TB]      int32 token ids into the fused rel|tem gate table
    gtab_ref: [4D, Vp]     f32  (emb @ W_ih + b)^T, gates fused on sublanes
    whh_ref : [4D, D]      bf16 W_hh^T, gates fused on sublanes
    he_ref  : [D, TB]      bf16 head entity embeddings (transposed)
    te_ref  : [D, TB]      bf16 tail entity embeddings (transposed)
    out_ref : [1, TB]      f32  negative-distance scores (lane-dense)
    xw_ref  : [S, 4D, TB]  f32  scratch: per-step input-to-gate pre-activations
    """
    S, TB = tok_ref.shape
    G4, Vp = gtab_ref.shape
    D = G4 // 4

    # ---- In-kernel gather of (x @ W_ih + b) via one-hot matmul (MXU). -----
    # gate_table already folds emb @ W_ih + bias, so selecting one column per
    # sample yields the full input-to-gate pre-activation.  All S steps are
    # gathered up front (off the serial path) into an explicit VMEM scratch.
    tok = tok_ref[...]                                           # [S, TB] int32
    row_ids = lax.broadcasted_iota(jnp.int32, (Vp, TB), 0)       # [Vp, TB]
    gtab = gtab_ref[...]                                         # [4D, Vp] f32
    for s in range(S):
        onehot = (row_ids == tok[s:s + 1, :]).astype(jnp.float32)  # [Vp, TB]
        xw_ref[s] = jnp.dot(gtab, onehot, preferred_element_type=jnp.float32)

    # ---- LSTM recurrence, batch on lanes, f32 state carried in vregs. -----
    # TODO(synk): on v6e/v7x the [4D, D] W_hh could be pinned in MXU staging
    # registers (pltpu.matmul_push_rhs / matmul_acc_lhs / matmul_pop) to shave
    # per-step fill latency; marginal at S=5 so left as a plain dot.
    whh_t = whh_ref[...]                                         # [4D, D] bf16
    h = jnp.zeros((D, TB), jnp.float32)
    c = jnp.zeros((D, TB), jnp.float32)
    for s in range(S):
        gates = xw_ref[s] + jnp.dot(whh_t, h.astype(jnp.bfloat16),
                                    preferred_element_type=jnp.float32)
        i = jax.nn.sigmoid(gates[0 * D:1 * D, :])
        f = jax.nn.sigmoid(gates[1 * D:2 * D, :])
        g = jnp.tanh(gates[2 * D:3 * D, :])
        o = jax.nn.sigmoid(gates[3 * D:4 * D, :])
        c = f * c + i * g
        h = o * jnp.tanh(c)

    # ---- TransE score; cross-sublane reduce (XLU), lane-dense store. ------
    diff = he_ref[...].astype(jnp.float32) + h - te_ref[...].astype(jnp.float32)
    if l1_flag:
        out_ref[...] = -jnp.sum(jnp.abs(diff), axis=0, keepdims=True)
    else:
        out_ref[...] = -jnp.sum(diff * diff, axis=0, keepdims=True)


def ta_transe_forward(samples, params, *, l1_flag=True, batch_tile=1024):
    """Layout plumbing + one batch-tiled Pallas call."""
    ent_w = params["ent"]      # [num_ent, D]
    rel_w = params["rel"]      # [num_rel, D]
    tem_w = params["tem"]      # [num_tem, D]
    wih, whh, bias = params["wih"], params["whh"], params["bias"]

    B = samples.shape[0]
    D = ent_w.shape[1]
    L = samples.shape[1] - 3
    S = L + 1                              # rel token + L temporal tokens
    num_rel = rel_w.shape[0]

    # ---- batch tile selection (multiple of 128; >= 2 tiles when possible,
    # so v7x's two TensorCores both get work via "parallel" semantics). ----
    tb = max(128, (int(batch_tile) // 128) * 128)
    b128 = pl.cdiv(B, 128) * 128
    if b128 >= 256:
        tb = min(tb, (b128 // 256) * 128)
    tb = max(128, min(tb, b128))
    B_pad = pl.cdiv(B, tb) * tb
    num_tiles = B_pad // tb

    if B_pad != B:
        # Padded rows use index 0 (valid lookups); their scores are discarded.
        samples = jnp.pad(samples, ((0, B_pad - B), (0, 0)))

    h_idx = samples[:, 0]
    r_idx = samples[:, 1]
    t_idx = samples[:, 2]
    tem_idx = samples[:, 3:]

    # Entity embeddings: gathered in the wrapper (large table), transposed to
    # batch-on-lanes [D, B_pad], cast bf16 (halves the dominant HBM stream).
    # TODO(synk): move this gather in-kernel (scalar-prefetch ids + DMA gather
    # from a pl.ANY entity table) to drop the wrapper-materialized copies.
    h_e = jnp.transpose(ent_w[h_idx]).astype(jnp.bfloat16)       # [D, B_pad]
    t_e = jnp.transpose(ent_w[t_idx]).astype(jnp.bfloat16)       # [D, B_pad]

    # rel/tem share one tiny fused vocabulary; only int32 ids stream from HBM.
    tokens = jnp.concatenate([r_idx[:, None], tem_idx + num_rel], axis=1)
    tokens = jnp.transpose(tokens).astype(jnp.int32)             # [S, B_pad]

    # Fold the small rel|tem table through W_ih and the combined bias once:
    # gate_table[v] = emb[v] @ W_ih_fused + (b_ih + b_hh), gate order i,f,g,o.
    wih_f = jnp.transpose(wih, (1, 0, 2)).reshape(D, 4 * D)      # [D, 4D]
    bias_f = bias.reshape(1, 4 * D)                              # [1, 4D]
    table = jnp.concatenate([rel_w, tem_w], axis=0)              # [V, D]
    gate_table_t = jnp.transpose(table @ wih_f + bias_f)         # [4D, V]
    V = table.shape[0]
    Vp = max(8, pl.cdiv(V, 8) * 8)
    if Vp != V:
        gate_table_t = jnp.pad(gate_table_t, ((0, 0), (0, Vp - V)))
    gate_table_t = gate_table_t.astype(jnp.float32)

    whh_t = jnp.transpose(whh, (0, 2, 1)).reshape(4 * D, D).astype(jnp.bfloat16)

    scores = pl.pallas_call(
        functools.partial(ta_transe_kernel, l1_flag=l1_flag),
        out_shape=jax.ShapeDtypeStruct((1, B_pad), jnp.float32),
        grid_spec=pltpu.PrefetchScalarGridSpec(
            num_scalar_prefetch=0,
            grid=(num_tiles,),
            in_specs=[
                pl.BlockSpec((S, tb), lambda i: (0, i)),          # token ids
                pl.BlockSpec((4 * D, Vp), lambda i: (0, 0)),      # gate table (resident)
                pl.BlockSpec((4 * D, D), lambda i: (0, 0)),       # W_hh^T (resident)
                pl.BlockSpec((D, tb), lambda i: (0, i)),          # head emb (bf16)
                pl.BlockSpec((D, tb), lambda i: (0, i)),          # tail emb (bf16)
            ],
            out_specs=pl.BlockSpec((1, tb), lambda i: (0, i)),    # lane-dense scores
            scratch_shapes=[pltpu.VMEM((S, 4 * D, tb), jnp.float32)],
        ),
        compiler_params=pltpu.CompilerParams(
            dimension_semantics=("parallel",),
            vmem_limit_bytes=32 * 1024 * 1024,
        ),
    )(tokens, gate_table_t, whh_t, h_e, t_e)

    return scores[0, :B], None   # (scores, factors)


def ta_transe_reference(samples, params, *, l1_flag=True):
    """Pure-JAX f32 reference of the same forward (for correctness check)."""
    ent_w, rel_w, tem_w = params["ent"], params["rel"], params["tem"]
    wih, whh, bias = params["wih"], params["whh"], params["bias"]

    h_e = ent_w[samples[:, 0]]
    t_e = ent_w[samples[:, 2]]
    r_e = rel_w[samples[:, 1]][:, None, :]
    tok_e = tem_w[samples[:, 3:]]
    seq = jnp.concatenate([r_e, tok_e], axis=1)      # [B, S, D]

    B, S, D = seq.shape
    h = jnp.zeros((B, D), jnp.float32)
    c = jnp.zeros((B, D), jnp.float32)
    for s in range(S):
        x = seq[:, s, :]
        i = jax.nn.sigmoid(x @ wih[0] + h @ whh[0] + bias[0])
        f = jax.nn.sigmoid(x @ wih[1] + h @ whh[1] + bias[1])
        g = jnp.tanh(x @ wih[2] + h @ whh[2] + bias[2])
        o = jax.nn.sigmoid(x @ wih[3] + h @ whh[3] + bias[3])
        c = f * c + i * g
        h = o * jnp.tanh(c)

    diff = h_e + h - t_e
    if l1_flag:
        return -jnp.sum(jnp.abs(diff), axis=1)
    return -jnp.sum(diff * diff, axis=1)


def init_params(key, num_ent, num_rel, num_tem, emb_dim):
    """Deterministic synthetic init mirroring the module's __init__ shapes."""
    k_ent, k_rel, k_tem, k_wih, k_whh, k_bih, k_bhh = jax.random.split(key, 7)

    def xavier(k, n, d):
        bound = np.sqrt(6.0 / (n + d))
        return jax.random.uniform(k, (n, d), jnp.float32, -bound, bound)

    ent = xavier(k_ent, num_ent, emb_dim)
    rel = xavier(k_rel, num_rel, emb_dim)
    tem = xavier(k_tem, num_tem, emb_dim)

    # torch.nn.LSTM default init: U(-1/sqrt(hidden), 1/sqrt(hidden)), gate
    # order (i, f, g, o).  Stored pre-transposed as [4, D, D] for x @ W.
    std = 1.0 / np.sqrt(emb_dim)
    wih = jax.random.uniform(k_wih, (4, emb_dim, emb_dim), jnp.float32, -std, std)
    whh = jax.random.uniform(k_whh, (4, emb_dim, emb_dim), jnp.float32, -std, std)
    b_ih = jax.random.uniform(k_bih, (4, 1, emb_dim), jnp.float32, -std, std)
    b_hh = jax.random.uniform(k_bhh, (4, 1, emb_dim), jnp.float32, -std, std)
    bias = b_ih + b_hh

    return {"ent": ent, "rel": rel, "tem": tem, "wih": wih, "whh": whh, "bias": bias}


if __name__ == "__main__":
    # Small, module-consistent shapes.
    B, D, L = 8, 32, 4          # batch, emb_dim, temporal token length
    NUM_ENT, NUM_REL, NUM_TEM = 16, 8, 32
    L1_FLAG = True              # model.l1_flag

    key = jax.random.PRNGKey(0)
    k_params, k_h, k_r, k_t, k_tem = jax.random.split(key, 5)

    params = init_params(k_params, NUM_ENT, NUM_REL, NUM_TEM, D)

    # samples: [B, 3 + L]  ->  (head, rel, tail, tem tokens...)
    samples = jnp.concatenate([
        jax.random.randint(k_h, (B, 1), 0, NUM_ENT),
        jax.random.randint(k_r, (B, 1), 0, NUM_REL),
        jax.random.randint(k_t, (B, 1), 0, NUM_ENT),
        jax.random.randint(k_tem, (B, L), 0, NUM_TEM),
    ], axis=1).astype(jnp.int32)

    scores, factors = ta_transe_forward(samples, params, l1_flag=L1_FLAG)
    scores = jax.block_until_ready(scores)

    ref = ta_transe_reference(samples, params, l1_flag=L1_FLAG)
    # bf16-streamed embeddings / bf16 recurrence matmul inputs (f32 accumulation
    # and f32 gate/state/score math) -> loosened tolerance vs the f32 reference.
    np.testing.assert_allclose(np.asarray(scores), np.asarray(ref),
                               rtol=2e-2, atol=2e-2)
    assert factors is None
    print("KERNEL_OK")
</pallas_src>

<mosaic_0001>
module attributes {stable_mosaic.version = 11 : i64} {
  func.func @ta_transe_kernel(%arg0: i32, %arg1: memref<5x128xi32, #tpu.memory_space<vmem>>, %arg2: memref<128x40xf32, #tpu.memory_space<vmem>>, %arg3: memref<128x32xbf16, #tpu.memory_space<vmem>>, %arg4: memref<32x128xbf16, #tpu.memory_space<vmem>>, %arg5: memref<32x128xbf16, #tpu.memory_space<vmem>>, %arg6: memref<1x128xf32, #tpu.memory_space<vmem>>, %arg7: memref<5x128x128xf32, #tpu.memory_space<vmem>>) attributes {dimension_semantics = [#tpu.dimension_semantics<parallel>], iteration_bounds = array<i64: 1>, scalar_prefetch = 0 : i64, scratch_operands = 1 : i64, tpu.core_type = #tpu.core_type<tc>, window_params = [{transform_indices = @transform_0, window_bounds = array<i64: 5, 128>}, {pipeline_mode = #tpu.pipeline_mode<synchronous>, transform_indices = @transform_1, window_bounds = array<i64: 128, 40>}, {pipeline_mode = #tpu.pipeline_mode<synchronous>, transform_indices = @transform_2, window_bounds = array<i64: 128, 32>}, {transform_indices = @transform_3, window_bounds = array<i64: 32, 128>}, {transform_indices = @transform_4, window_bounds = array<i64: 32, 128>}, {transform_indices = @transform_5, window_bounds = array<i64: 1, 128>}]} {
    %c0 = arith.constant 0 : index
    %c0_0 = arith.constant 0 : index
    %0 = vector.load %arg1[%c0, %c0_0] : memref<5x128xi32, #tpu.memory_space<vmem>>, vector<5x128xi32>
    %1 = tpu.iota {dimensions = array<i32: 0>} : vector<40x128xi32>
    %c0_1 = arith.constant 0 : index
    %c0_2 = arith.constant 0 : index
    %2 = vector.load %arg2[%c0_1, %c0_2] : memref<128x40xf32, #tpu.memory_space<vmem>>, vector<128x40xf32>
    %3 = vector.extract_strided_slice %0 {offsets = [0, 0], sizes = [1, 128], strides = [1, 1]} : vector<5x128xi32> to vector<1x128xi32>
    %4 = vector.broadcast %3 : vector<1x128xi32> to vector<40x128xi32>
    %5 = arith.cmpi eq, %1, %4 : vector<40x128xi32>
    %6 = arith.extui %5 : vector<40x128xi1> to vector<40x128xi32>
    %7 = arith.sitofp %6 : vector<40x128xi32> to vector<40x128xf32>
    %cst = arith.constant dense<0.000000e+00> : vector<128x128xf32>
    %8 = tpu.matmul %2, %7, %cst {dimension_numbers = #tpu.dot_dimension_numbers<[1], [0], [0], [1], [0, 0, 1, 1], [], []>} : vector<128x40xf32>, vector<40x128xf32>, vector<128x128xf32> -> vector<128x128xf32>
    %c0_3 = arith.constant 0 : index
    %c0_4 = arith.constant 0 : index
    %c0_5 = arith.constant 0 : index
    %9 = vector.load %arg7[%c0_3, %c0_4, %c0_5] : memref<5x128x128xf32, #tpu.memory_space<vmem>>, vector<1x128x128xf32>
    %10 = vector.shape_cast %9 : vector<1x128x128xf32> to vector<128x128xf32>
    %11 = vector.shape_cast %8 : vector<128x128xf32> to vector<1x128x128xf32>
    tpu.vector_store %arg7[%c0_3, %c0_4, %c0_5], %11 {strides = array<i32>} : memref<5x128x128xf32, #tpu.memory_space<vmem>>, vector<1x128x128xf32>,
    %12 = vector.extract_strided_slice %0 {offsets = [1, 0], sizes = [1, 128], strides = [1, 1]} : vector<5x128xi32> to vector<1x128xi32>
    %13 = vector.broadcast %12 : vector<1x128xi32> to vector<40x128xi32>
    %14 = arith.cmpi eq, %1, %13 : vector<40x128xi32>
    %15 = arith.extui %14 : vector<40x128xi1> to vector<40x128xi32>
    %16 = arith.sitofp %15 : vector<40x128xi32> to vector<40x128xf32>
    %cst_6 = arith.constant dense<0.000000e+00> : vector<128x128xf32>
    %17 = tpu.matmul %2, %16, %cst_6 {dimension_numbers = #tpu.dot_dimension_numbers<[1], [0], [0], [1], [0, 0, 1, 1], [], []>} : vector<128x40xf32>, vector<40x128xf32>, vector<128x128xf32> -> vector<128x128xf32>
    %c1 = arith.constant 1 : index
    %c0_7 = arith.constant 0 : index
    %c0_8 = arith.constant 0 : index
    %18 = vector.load %arg7[%c1, %c0_7, %c0_8] : memref<5x128x128xf32, #tpu.memory_space<vmem>>, vector<1x128x128xf32>
    %19 = vector.shape_cast %18 : vector<1x128x128xf32> to vector<128x128xf32>
    %20 = vector.shape_cast %17 : vector<128x128xf32> to vector<1x128x128xf32>
    tpu.vector_store %arg7[%c1, %c0_7, %c0_8], %20 {strides = array<i32>} : memref<5x128x128xf32, #tpu.memory_space<vmem>>, vector<1x128x128xf32>,
    %21 = vector.extract_strided_slice %0 {offsets = [2, 0], sizes = [1, 128], strides = [1, 1]} : vector<5x128xi32> to vector<1x128xi32>
    %22 = vector.broadcast %21 : vector<1x128xi32> to vector<40x128xi32>
    %23 = arith.cmpi eq, %1, %22 : vector<40x128xi32>
    %24 = arith.extui %23 : vector<40x128xi1> to vector<40x128xi32>
    %25 = arith.sitofp %24 : vector<40x128xi32> to vector<40x128xf32>
    %cst_9 = arith.constant dense<0.000000e+00> : vector<128x128xf32>
    %26 = tpu.matmul %2, %25, %cst_9 {dimension_numbers = #tpu.dot_dimension_numbers<[1], [0], [0], [1], [0, 0, 1, 1], [], []>} : vector<128x40xf32>, vector<40x128xf32>, vector<128x128xf32> -> vector<128x128xf32>
    %c2 = arith.constant 2 : index
    %c0_10 = arith.constant 0 : index
    %c0_11 = arith.constant 0 : index
    %27 = vector.load %arg7[%c2, %c0_10, %c0_11] : memref<5x128x128xf32, #tpu.memory_space<vmem>>, vector<1x128x128xf32>
    %28 = vector.shape_cast %27 : vector<1x128x128xf32> to vector<128x128xf32>
    %29 = vector.shape_cast %26 : vector<128x128xf32> to vector<1x128x128xf32>
    tpu.vector_store %arg7[%c2, %c0_10, %c0_11], %29 {strides = array<i32>} : memref<5x128x128xf32, #tpu.memory_space<vmem>>, vector<1x128x128xf32>,
    %30 = vector.extract_strided_slice %0 {offsets = [3, 0], sizes = [1, 128], strides = [1, 1]} : vector<5x128xi32> to vector<1x128xi32>
    %31 = vector.broadcast %30 : vector<1x128xi32> to vector<40x128xi32>
    %32 = arith.cmpi eq, %1, %31 : vector<40x128xi32>
    %33 = arith.extui %32 : vector<40x128xi1> to vector<40x128xi32>
    %34 = arith.sitofp %33 : vector<40x128xi32> to vector<40x128xf32>
    %cst_12 = arith.constant dense<0.000000e+00> : vector<128x128xf32>
    %35 = tpu.matmul %2, %34, %cst_12 {dimension_numbers = #tpu.dot_dimension_numbers<[1], [0], [0], [1], [0, 0, 1, 1], [], []>} : vector<128x40xf32>, vector<40x128xf32>, vector<128x128xf32> -> vector<128x128xf32>
    %c3 = arith.constant 3 : index
    %c0_13 = arith.constant 0 : index
    %c0_14 = arith.constant 0 : index
    %36 = vector.load %arg7[%c3, %c0_13, %c0_14] : memref<5x128x128xf32, #tpu.memory_space<vmem>>, vector<1x128x128xf32>
    %37 = vector.shape_cast %36 : vector<1x128x128xf32> to vector<128x128xf32>
    %38 = vector.shape_cast %35 : vector<128x128xf32> to vector<1x128x128xf32>
    tpu.vector_store %arg7[%c3, %c0_13, %c0_14], %38 {strides = array<i32>} : memref<5x128x128xf32, #tpu.memory_space<vmem>>, vector<1x128x128xf32>,
    %39 = vector.extract_strided_slice %0 {offsets = [4, 0], sizes = [1, 128], strides = [1, 1]} : vector<5x128xi32> to vector<1x128xi32>
    %40 = vector.broadcast %39 : vector<1x128xi32> to vector<40x128xi32>
    %41 = arith.cmpi eq, %1, %40 : vector<40x128xi32>
    %42 = arith.extui %41 : vector<40x128xi1> to vector<40x128xi32>
    %43 = arith.sitofp %42 : vector<40x128xi32> to vector<40x128xf32>
    %cst_15 = arith.constant dense<0.000000e+00> : vector<128x128xf32>
    %44 = tpu.matmul %2, %43, %cst_15 {dimension_numbers = #tpu.dot_dimension_numbers<[1], [0], [0], [1], [0, 0, 1, 1], [], []>} : vector<128x40xf32>, vector<40x128xf32>, vector<128x128xf32> -> vector<128x128xf32>
    %c4 = arith.constant 4 : index
    %c0_16 = arith.constant 0 : index
    %c0_17 = arith.constant 0 : index
    %45 = vector.load %arg7[%c4, %c0_16, %c0_17] : memref<5x128x128xf32, #tpu.memory_space<vmem>>, vector<1x128x128xf32>
    %46 = vector.shape_cast %45 : vector<1x128x128xf32> to vector<128x128xf32>
    %47 = vector.shape_cast %44 : vector<128x128xf32> to vector<1x128x128xf32>
    tpu.vector_store %arg7[%c4, %c0_16, %c0_17], %47 {strides = array<i32>} : memref<5x128x128xf32, #tpu.memory_space<vmem>>, vector<1x128x128xf32>,
    %c0_18 = arith.constant 0 : index
    %c0_19 = arith.constant 0 : index
    %48 = vector.load %arg3[%c0_18, %c0_19] : memref<128x32xbf16, #tpu.memory_space<vmem>>, vector<128x32xbf16>
    %cst_20 = arith.constant 0.000000e+00 : f32
    %49 = vector.broadcast %cst_20 : f32 to vector<32x128xf32>
    %cst_21 = arith.constant 0.000000e+00 : f32
    %50 = vector.broadcast %cst_21 : f32 to vector<32x128xf32>
    %c0_22 = arith.constant 0 : index
    %c0_23 = arith.constant 0 : index
    %c0_24 = arith.constant 0 : index
    %51 = vector.load %arg7[%c0_22, %c0_23, %c0_24] : memref<5x128x128xf32, #tpu.memory_space<vmem>>, vector<1x128x128xf32>
    %52 = vector.shape_cast %51 : vector<1x128x128xf32> to vector<128x128xf32>
    %53 = arith.truncf %49 : vector<32x128xf32> to vector<32x128xbf16>
    %cst_25 = arith.constant dense<0.000000e+00> : vector<128x128xf32>
    %54 = tpu.matmul %48, %53, %cst_25 {dimension_numbers = #tpu.dot_dimension_numbers<[1], [0], [0], [1], [0, 0, 1, 1], [], []>} : vector<128x32xbf16>, vector<32x128xbf16>, vector<128x128xf32> -> vector<128x128xf32>
    %55 = arith.addf %52, %54 : vector<128x128xf32>
    %56 = vector.extract_strided_slice %55 {offsets = [0, 0], sizes = [32, 128], strides = [1, 1]} : vector<128x128xf32> to vector<32x128xf32>
    %57 = arith.negf %56 : vector<32x128xf32>
    %58 = math.exp %57 : vector<32x128xf32>
    %cst_26 = arith.constant 1.000000e+00 : f32
    %59 = vector.broadcast %cst_26 : f32 to vector<32x128xf32>
    %60 = arith.addf %59, %58 : vector<32x128xf32>
    %61 = arith.divf %59, %60 : vector<32x128xf32>
    %62 = vector.extract_strided_slice %55 {offsets = [32, 0], sizes = [32, 128], strides = [1, 1]} : vector<128x128xf32> to vector<32x128xf32>
    %63 = arith.negf %62 : vector<32x128xf32>
    %64 = math.exp %63 : vector<32x128xf32>
    %cst_27 = arith.constant 1.000000e+00 : f32
    %65 = vector.broadcast %cst_27 : f32 to vector<32x128xf32>
    %66 = arith.addf %65, %64 : vector<32x128xf32>
    %67 = arith.divf %65, %66 : vector<32x128xf32>
    %68 = vector.extract_strided_slice %55 {offsets = [64, 0], sizes = [32, 128], strides = [1, 1]} : vector<128x128xf32> to vector<32x128xf32>
    %69 = math.tanh %68 : vector<32x128xf32>
    %70 = vector.extract_strided_slice %55 {offsets = [96, 0], sizes = [32, 128], strides = [1, 1]} : vector<128x128xf32> to vector<32x128xf32>
    %71 = arith.negf %70 : vector<32x128xf32>
    %72 = math.exp %71 : vector<32x128xf32>
    %cst_28 = arith.constant 1.000000e+00 : f32
    %73 = vector.broadcast %cst_28 : f32 to vector<32x128xf32>
    %74 = arith.addf %73, %72 : vector<32x128xf32>
    %75 = arith.divf %73, %74 : vector<32x128xf32>
    %76 = arith.mulf %67, %50 : vector<32x128xf32>
    %77 = arith.mulf %61, %69 : vector<32x128xf32>
    %78 = arith.addf %76, %77 : vector<32x128xf32>
    %79 = math.tanh %78 : vector<32x128xf32>
    %80 = arith.mulf %75, %79 : vector<32x128xf32>
    %c1_29 = arith.constant 1 : index
    %c0_30 = arith.constant 0 : index
    %c0_31 = arith.constant 0 : index
    %81 = vector.load %arg7[%c1_29, %c0_30, %c0_31] : memref<5x128x128xf32, #tpu.memory_space<vmem>>, vector<1x128x128xf32>
    %82 = vector.shape_cast %81 : vector<1x128x128xf32> to vector<128x128xf32>
    %83 = arith.truncf %80 : vector<32x128xf32> to vector<32x128xbf16>
    %cst_32 = arith.constant dense<0.000000e+00> : vector<128x128xf32>
    %84 = tpu.matmul %48, %83, %cst_32 {dimension_numbers = #tpu.dot_dimension_numbers<[1], [0], [0], [1], [0, 0, 1, 1], [], []>} : vector<128x32xbf16>, vector<32x128xbf16>, vector<128x128xf32> -> vector<128x128xf32>
    %85 = arith.addf %82, %84 : vector<128x128xf32>
    %86 = vector.extract_strided_slice %85 {offsets = [0, 0], sizes = [32, 128], strides = [1, 1]} : vector<128x128xf32> to vector<32x128xf32>
    %87 = arith.negf %86 : vector<32x128xf32>
    %88 = math.exp %87 : vector<32x128xf32>
    %cst_33 = arith.constant 1.000000e+00 : f32
    %89 = vector.broadcast %cst_33 : f32 to vector<32x128xf32>
    %90 = arith.addf %89, %88 : vector<32x128xf32>
    %91 = arith.divf %89, %90 : vector<32x128xf32>
    %92 = vector.extract_strided_slice %85 {offsets = [32, 0], sizes = [32, 128], strides = [1, 1]} : vector<128x128xf32> to vector<32x128xf32>
    %93 = arith.negf %92 : vector<32x128xf32>
    %94 = math.exp %93 : vector<32x128xf32>
    %cst_34 = arith.constant 1.000000e+00 : f32
    %95 = vector.broadcast %cst_34 : f32 to vector<32x128xf32>
    %96 = arith.addf %95, %94 : vector<32x128xf32>
    %97 = arith.divf %95, %96 : vector<32x128xf32>
    %98 = vector.extract_strided_slice %85 {offsets = [64, 0], sizes = [32, 128], strides = [1, 1]} : vector<128x128xf32> to vector<32x128xf32>
    %99 = math.tanh %98 : vector<32x128xf32>
    %100 = vector.extract_strided_slice %85 {offsets = [96, 0], sizes = [32, 128], strides = [1, 1]} : vector<128x128xf32> to vector<32x128xf32>
    %101 = arith.negf %100 : vector<32x128xf32>
    %102 = math.exp %101 : vector<32x128xf32>
    %cst_35 = arith.constant 1.000000e+00 : f32
    %103 = vector.broadcast %cst_35 : f32 to vector<32x128xf32>
    %104 = arith.addf %103, %102 : vector<32x128xf32>
    %105 = arith.divf %103, %104 : vector<32x128xf32>
    %106 = arith.mulf %97, %78 : vector<32x128xf32>
    %107 = arith.mulf %91, %99 : vector<32x128xf32>
    %108 = arith.addf %106, %107 : vector<32x128xf32>
    %109 = math.tanh %108 : vector<32x128xf32>
    %110 = arith.mulf %105, %109 : vector<32x128xf32>
    %c2_36 = arith.constant 2 : index
    %c0_37 = arith.constant 0 : index
    %c0_38 = arith.constant 0 : index
    %111 = vector.load %arg7[%c2_36, %c0_37, %c0_38] : memref<5x128x128xf32, #tpu.memory_space<vmem>>, vector<1x128x128xf32>
    %112 = vector.shape_cast %111 : vector<1x128x128xf32> to vector<128x128xf32>
    %113 = arith.truncf %110 : vector<32x128xf32> to vector<32x128xbf16>
    %cst_39 = arith.constant dense<0.000000e+00> : vector<128x128xf32>
    %114 = tpu.matmul %48, %113, %cst_39 {dimension_numbers = #tpu.dot_dimension_numbers<[1], [0], [0], [1], [0, 0, 1, 1], [], []>} : vector<128x32xbf16>, vector<32x128xbf16>, vector<128x128xf32> -> vector<128x128xf32>
    %115 = arith.addf %112, %114 : vector<128x128xf32>
    %116 = vector.extract_strided_slice %115 {offsets = [0, 0], sizes = [32, 128], strides = [1, 1]} : vector<128x128xf32> to vector<32x128xf32>
    %117 = arith.negf %116 : vector<32x128xf32>
    %118 = math.exp %117 : vector<32x128xf32>
    %cst_40 = arith.constant 1.000000e+00 : f32
    %119 = vector.broadcast %cst_40 : f32 to vector<32x128xf32>
    %120 = arith.addf %119, %118 : vector<32x128xf32>
    %121 = arith.divf %119, %120 : vector<32x128xf32>
    %122 = vector.extract_strided_slice %115 {offsets = [32, 0], sizes = [32, 128], strides = [1, 1]} : vector<128x128xf32> to vector<32x128xf32>
    %123 = arith.negf %122 : vector<32x128xf32>
    %124 = math.exp %123 : vector<32x128xf32>
    %cst_41 = arith.constant 1.000000e+00 : f32
    %125 = vector.broadcast %cst_41 : f32 to vector<32x128xf32>
    %126 = arith.addf %125, %124 : vector<32x128xf32>
    %127 = arith.divf %125, %126 : vector<32x128xf32>
    %128 = vector.extract_strided_slice %115 {offsets = [64, 0], sizes = [32, 128], strides = [1, 1]} : vector<128x128xf32> to vector<32x128xf32>
    %129 = math.tanh %128 : vector<32x128xf32>
    %130 = vector.extract_strided_slice %115 {offsets = [96, 0], sizes = [32, 128], strides = [1, 1]} : vector<128x128xf32> to vector<32x128xf32>
    %131 = arith.negf %130 : vector<32x128xf32>
    %132 = math.exp %131 : vector<32x128xf32>
    %cst_42 = arith.constant 1.000000e+00 : f32
    %133 = vector.broadcast %cst_42 : f32 to vector<32x128xf32>
    %134 = arith.addf %133, %132 : vector<32x128xf32>
    %135 = arith.divf %133, %134 : vector<32x128xf32>
    %136 = arith.mulf %127, %108 : vector<32x128xf32>
    %137 = arith.mulf %121, %129 : vector<32x128xf32>
    %138 = arith.addf %136, %137 : vector<32x128xf32>
    %139 = math.tanh %138 : vector<32x128xf32>
    %140 = arith.mulf %135, %139 : vector<32x128xf32>
    %c3_43 = arith.constant 3 : index
    %c0_44 = arith.constant 0 : index
    %c0_45 = arith.constant 0 : index
    %141 = vector.load %arg7[%c3_43, %c0_44, %c0_45] : memref<5x128x128xf32, #tpu.memory_space<vmem>>, vector<1x128x128xf32>
    %142 = vector.shape_cast %141 : vector<1x128x128xf32> to vector<128x128xf32>
    %143 = arith.truncf %140 : vector<32x128xf32> to vector<32x128xbf16>
    %cst_46 = arith.constant dense<0.000000e+00> : vector<128x128xf32>
    %144 = tpu.matmul %48, %143, %cst_46 {dimension_numbers = #tpu.dot_dimension_numbers<[1], [0], [0], [1], [0, 0, 1, 1], [], []>} : vector<128x32xbf16>, vector<32x128xbf16>, vector<128x128xf32> -> vector<128x128xf32>
    %145 = arith.addf %142, %144 : vector<128x128xf32>
    %146 = vector.extract_strided_slice %145 {offsets = [0, 0], sizes = [32, 128], strides = [1, 1]} : vector<128x128xf32> to vector<32x128xf32>
    %147 = arith.negf %146 : vector<32x128xf32>
    %148 = math.exp %147 : vector<32x128xf32>
    %cst_47 = arith.constant 1.000000e+00 : f32
    %149 = vector.broadcast %cst_47 : f32 to vector<32x128xf32>
    %150 = arith.addf %149, %148 : vector<32x128xf32>
    %151 = arith.divf %149, %150 : vector<32x128xf32>
    %152 = vector.extract_strided_slice %145 {offsets = [32, 0], sizes = [32, 128], strides = [1, 1]} : vector<128x128xf32> to vector<32x128xf32>
    %153 = arith.negf %152 : vector<32x128xf32>
    %154 = math.exp %153 : vector<32x128xf32>
    %cst_48 = arith.constant 1.000000e+00 : f32
    %155 = vector.broadcast %cst_48 : f32 to vector<32x128xf32>
    %156 = arith.addf %155, %154 : vector<32x128xf32>
    %157 = arith.divf %155, %156 : vector<32x128xf32>
    %158 = vector.extract_strided_slice %145 {offsets = [64, 0], sizes = [32, 128], strides = [1, 1]} : vector<128x128xf32> to vector<32x128xf32>
    %159 = math.tanh %158 : vector<32x128xf32>
    %160 = vector.extract_strided_slice %145 {offsets = [96, 0], sizes = [32, 128], strides = [1, 1]} : vector<128x128xf32> to vector<32x128xf32>
    %161 = arith.negf %160 : vector<32x128xf32>
    %162 = math.exp %161 : vector<32x128xf32>
    %cst_49 = arith.constant 1.000000e+00 : f32
    %163 = vector.broadcast %cst_49 : f32 to vector<32x128xf32>
    %164 = arith.addf %163, %162 : vector<32x128xf32>
    %165 = arith.divf %163, %164 : vector<32x128xf32>
    %166 = arith.mulf %157, %138 : vector<32x128xf32>
    %167 = arith.mulf %151, %159 : vector<32x128xf32>
    %168 = arith.addf %166, %167 : vector<32x128xf32>
    %169 = math.tanh %168 : vector<32x128xf32>
    %170 = arith.mulf %165, %169 : vector<32x128xf32>
    %c4_50 = arith.constant 4 : index
    %c0_51 = arith.constant 0 : index
    %c0_52 = arith.constant 0 : index
    %171 = vector.load %arg7[%c4_50, %c0_51, %c0_52] : memref<5x128x128xf32, #tpu.memory_space<vmem>>, vector<1x128x128xf32>
    %172 = vector.shape_cast %171 : vector<1x128x128xf32> to vector<128x128xf32>
    %173 = arith.truncf %170 : vector<32x128xf32> to vector<32x128xbf16>
    %cst_53 = arith.constant dense<0.000000e+00> : vector<128x128xf32>
    %174 = tpu.matmul %48, %173, %cst_53 {dimension_numbers = #tpu.dot_dimension_numbers<[1], [0], [0], [1], [0, 0, 1, 1], [], []>} : vector<128x32xbf16>, vector<32x128xbf16>, vector<128x128xf32> -> vector<128x128xf32>
    %175 = arith.addf %172, %174 : vector<128x128xf32>
    %176 = vector.extract_strided_slice %175 {offsets = [0, 0], sizes = [32, 128], strides = [1, 1]} : vector<128x128xf32> to vector<32x128xf32>
    %177 = arith.negf %176 : vector<32x128xf32>
    %178 = math.exp %177 : vector<32x128xf32>
    %cst_54 = arith.constant 1.000000e+00 : f32
    %179 = vector.broadcast %cst_54 : f32 to vector<32x128xf32>
    %180 = arith.addf %179, %178 : vector<32x128xf32>
    %181 = arith.divf %179, %180 : vector<32x128xf32>
    %182 = vector.extract_strided_slice %175 {offsets = [32, 0], sizes = [32, 128], strides = [1, 1]} : vector<128x128xf32> to vector<32x128xf32>
    %183 = arith.negf %182 : vector<32x128xf32>
    %184 = math.exp %183 : vector<32x128xf32>
    %cst_55 = arith.constant 1.000000e+00 : f32
    %185 = vector.broadcast %cst_55 : f32 to vector<32x128xf32>
    %186 = arith.addf %185, %184 : vector<32x128xf32>
    %187 = arith.divf %185, %186 : vector<32x128xf32>
    %188 = vector.extract_strided_slice %175 {offsets = [64, 0], sizes = [32, 128], strides = [1, 1]} : vector<128x128xf32> to vector<32x128xf32>
    %189 = math.tanh %188 : vector<32x128xf32>
    %190 = vector.extract_strided_slice %175 {offsets = [96, 0], sizes = [32, 128], strides = [1, 1]} : vector<128x128xf32> to vector<32x128xf32>
    %191 = arith.negf %190 : vector<32x128xf32>
    %192 = math.exp %191 : vector<32x128xf32>
    %cst_56 = arith.constant 1.000000e+00 : f32
    %193 = vector.broadcast %cst_56 : f32 to vector<32x128xf32>
    %194 = arith.addf %193, %192 : vector<32x128xf32>
    %195 = arith.divf %193, %194 : vector<32x128xf32>
    %196 = arith.mulf %187, %168 : vector<32x128xf32>
    %197 = arith.mulf %181, %189 : vector<32x128xf32>
    %198 = arith.addf %196, %197 : vector<32x128xf32>
    %199 = math.tanh %198 : vector<32x128xf32>
    %200 = arith.mulf %195, %199 : vector<32x128xf32>
    %c0_57 = arith.constant 0 : index
    %c0_58 = arith.constant 0 : index
    %201 = vector.load %arg4[%c0_57, %c0_58] : memref<32x128xbf16, #tpu.memory_space<vmem>>, vector<32x128xbf16>
    %202 = arith.extf %201 : vector<32x128xbf16> to vector<32x128xf32>
    %203 = arith.addf %202, %200 : vector<32x128xf32>
    %c0_59 = arith.constant 0 : index
    %c0_60 = arith.constant 0 : index
    %204 = vector.load %arg5[%c0_59, %c0_60] : memref<32x128xbf16, #tpu.memory_space<vmem>>, vector<32x128xbf16>
    %205 = arith.extf %204 : vector<32x128xbf16> to vector<32x128xf32>
    %206 = arith.subf %203, %205 : vector<32x128xf32>
    %207 = math.absf %206 : vector<32x128xf32>
    %cst_61 = arith.constant dense<0.000000e+00> : vector<128xf32>
    %208 = vector.multi_reduction <add>, %207, %cst_61 [0] : vector<32x128xf32> to vector<128xf32>
    %209 = vector.shape_cast %208 : vector<128xf32> to vector<1x128xf32>
    %cst_62 = arith.constant 0.000000e+00 : f32
    %210 = vector.broadcast %cst_62 : f32 to vector<1x128xf32>
    %211 = arith.subf %210, %209 : vector<1x128xf32>
    %c0_63 = arith.constant 0 : index
    %c0_64 = arith.constant 0 : index
    %212 = vector.load %arg6[%c0_63, %c0_64] : memref<1x128xf32, #tpu.memory_space<vmem>>, vector<1x128xf32>
    tpu.vector_store %arg6[%c0_63, %c0_64], %211 {strides = array<i32>} : memref<1x128xf32, #tpu.memory_space<vmem>>, vector<1x128xf32>,
    return
  }
  func.func @transform_0(%arg0: i32) -> (i32, i32) {
    %c0_i32 = arith.constant 0 : i32
    %c0_i32_0 = arith.constant 0 : i32
    return %c0_i32, %arg0 : i32, i32
  }
  func.func @transform_1(%arg0: i32) -> (i32, i32) {
    %c0_i32 = arith.constant 0 : i32
    %c0_i32_0 = arith.constant 0 : i32
    %c0_i32_1 = arith.constant 0 : i32
    return %c0_i32, %c0_i32_0 : i32, i32
  }
  func.func @transform_2(%arg0: i32) -> (i32, i32) {
    %c0_i32 = arith.constant 0 : i32
    %c0_i32_0 = arith.constant 0 : i32
    %c0_i32_1 = arith.constant 0 : i32
    return %c0_i32, %c0_i32_0 : i32, i32
  }
  func.func @transform_3(%arg0: i32) -> (i32, i32) {
    %c0_i32 = arith.constant 0 : i32
    %c0_i32_0 = arith.constant 0 : i32
    return %c0_i32, %arg0 : i32, i32
  }
  func.func @transform_4(%arg0: i32) -> (i32, i32) {
    %c0_i32 = arith.constant 0 : i32
    %c0_i32_0 = arith.constant 0 : i32
    return %c0_i32, %arg0 : i32, i32
  }
  func.func @transform_5(%arg0: i32) -> (i32, i32) {
    %c0_i32 = arith.constant 0 : i32
    %c0_i32_0 = arith.constant 0 : i32
    return %c0_i32, %arg0 : i32, i32
  }
}

</mosaic_0001>

<llo_original>
// kernel: tpu_custom_call.1
$region0: #{tpu_custom_call.1}
  #allocation0 [shape = 'u32[]', space=smem, size = 0x4, offset = 0x4, fixed_abs, tag = 'smem constant byte address 0x4 - core index']
  #allocation1 [shape = 'u32[144,128]{1,0:T(1,128)}', space=vmem, size = 0x12000, scoped, tag = 'internal scratch']
  #allocation2 [shape = 'f32[5,128,128]{2,1,0:T(8,128)}', space=vmem, size = 0x50000, scoped, tag = 'scratch operand']
  %s0 = inlined_call_operand.vmem [shape: s32[5,128], index: 0, kind: input, shape index: {}]
  %s1 = inlined_call_operand.vmem [shape: f32[128,40], index: 1, kind: input, shape index: {}]
  %s2 = inlined_call_operand.vmem [shape: bf16[128,32], index: 2, kind: input, shape index: {}]
  %s3 = inlined_call_operand.vmem [shape: bf16[32,128], index: 3, kind: input, shape index: {}]
  %s4 = inlined_call_operand.vmem [shape: bf16[32,128], index: 4, kind: input, shape index: {}]
  %s5 = inlined_call_operand.hbm [shape: f32[1,128], index: 5, kind: output, shape index: {}]
  %s6 = sld [smem:[#allocation0]]
  $region30: #{tpu_custom_call.1} parent=0
    _
  %s8 = ssub.s32 1, %s6
  %s9 = scalar_select 0, %s8, %s6
  $region1: #{tpu_custom_call.1} parent=0
    #allocation3 [shape = 'u8[512]{0}', space=vmem, size = 0x400, scoped, tag = 'output window, operand 0, single buffered']
    #allocation4 [shape = 's32[1]{0}', space=sflag, size = 0x4, scoped, tag = 'scoped memory for tpu_custom_call.1']
    %10 = vsyncpa [#allocation4], 0
    // Predicated region
    $region2: #{tpu_custom_call.1} parent=1 // pred_check
      _
    $region3: #{tpu_custom_call.1} parent=1 // pred_check_branch
      %12 = sbr.rel (0) target = $region5
    $region4: #{tpu_custom_call.1} parent=1 // pred_region
      _
    $region5: #{tpu_custom_call.1} parent=1 // pred_fallthru
      _
    // Predicated region
    $region6: #{tpu_custom_call.1} parent=1 // pred_check
      _
    $region7: #{tpu_custom_call.1} parent=1 // pred_check_branch
      %14 = sbr.rel (0) target = $region9
    $region8: #{tpu_custom_call.1} parent=1 // pred_region
      _
    $region9: #{tpu_custom_call.1} parent=1 // pred_fallthru
      _
    // Predicated region
    $region10: #{tpu_custom_call.1} parent=1 // pred_check
      _
    $region11: #{tpu_custom_call.1} parent=1 // pred_check_branch
      %16 = sbr.rel (0) target = $region13
    $region12: #{tpu_custom_call.1} parent=1 // pred_region
      _
    $region13: #{tpu_custom_call.1} parent=1 // pred_fallthru
      _
    // Predicated region
    $region14: #{tpu_custom_call.1} parent=1 // pred_check
      _
    $region15: #{tpu_custom_call.1} parent=1 // pred_check_branch
      %18 = sbr.rel (0) target = $region17
    $region16: #{tpu_custom_call.1} parent=1 // pred_region
      _
    $region17: #{tpu_custom_call.1} parent=1 // pred_fallthru
      _
    // Predicated region
    $region18: #{tpu_custom_call.1} parent=1 // pred_check
      _
    $region19: #{tpu_custom_call.1} parent=1 // pred_check_branch
      %20 = sbr.rel (0) target = $region21
    $region20: #{tpu_custom_call.1} parent=1 // pred_region
      _
    $region21: #{tpu_custom_call.1} parent=1 // pred_fallthru
      _
    %v22 = vld [vmem:[%s0] sm:$0x1f]
    %v23 = vlaneseq
    %v24 = vshrl.u32 %v23, 7
    %v25 = vadd.s32 %v24, 8
    %v26 = vadd.s32 %v24, 16
    %v27 = vadd.s32 %v24, 24
    %v28 = vadd.s32 %v24, 32
    %v29 = vld [vmem:[%s1] sm:$0xff]
    %v30 = vld [vmem:[%s1 + $0x8] sm:$0xff]
    %v31 = vld [vmem:[%s1 + $0x10] sm:$0xff]
    %v32 = vld [vmem:[%s1 + $0x18] sm:$0xff]
    %v33 = vld [vmem:[%s1 + $0x20] sm:$0xff]
    %v34 = vld [vmem:[%s1 + $0x28] sm:$0xff]
    %v35 = vld [vmem:[%s1 + $0x30] sm:$0xff]
    %v36 = vld [vmem:[%s1 + $0x38] sm:$0xff]
    %v37 = vld [vmem:[%s1 + $0x40] sm:$0xff]
    %v38 = vld [vmem:[%s1 + $0x48] sm:$0xff]
    %v39 = vld [vmem:[%s1 + $0x50] sm:$0xff]
    %v40 = vld [vmem:[%s1 + $0x58] sm:$0xff]
    %v41 = vld [vmem:[%s1 + $0x60] sm:$0xff]
    %v42 = vld [vmem:[%s1 + $0x68] sm:$0xff]
    %v43 = vld [vmem:[%s1 + $0x70] sm:$0xff]
    %v44 = vld [vmem:[%s1 + $0x78] sm:$0xff]
    %v45 = vlaneseq
    %v46 = vshrl.u32 %v45, 7
    %v47 = vsub.s32 0, %v46
    %v48 = vrot.slane %v22, %v47
    %vm49 = vcmp.eq.s32.totalorder %v24, %v48
    %vm50 = vcmp.eq.s32.totalorder %v25, %v48
    %vm51 = vcmp.eq.s32.totalorder %v26, %v48
    %vm52 = vcmp.eq.s32.totalorder %v27, %v48
    %vm53 = vcmp.eq.s32.totalorder %v28, %v48
    %v54 = vsel %vm49, 1, 0
    %v55 = vsel %vm50, 1, 0
    %v56 = vsel %vm51, 1, 0
    %v57 = vsel %vm52, 1, 0
    %v58 = vsel %vm53, 1, 0
    %v59 = vcvt.s32.f32 %v54
    %v60 = vcvt.s32.f32 %v55
    %v61 = vcvt.s32.f32 %v56
    %v62 = vcvt.s32.f32 %v57
    %v63 = vcvt.s32.f32 %v58
    %vm64 = vcmask 326656
    %v66 = vsel %vm64, %v29, 0
    %v69 = vsel %vm64, %v30, 0
    %v72 = vsel %vm64, %v31, 0
    %v75 = vsel %vm64, %v32, 0
    %v78 = vsel %vm64, %v33, 0
    %v81 = vsel %vm64, %v34, 0
    %v84 = vsel %vm64, %v35, 0
    %v87 = vsel %vm64, %v36, 0
    %v90 = vsel %vm64, %v37, 0
    %v93 = vsel %vm64, %v38, 0
    %v96 = vsel %vm64, %v39, 0
    %v99 = vsel %vm64, %v40, 0
    %v102 = vsel %vm64, %v41, 0
    %v105 = vsel %vm64, %v42, 0
    %v108 = vsel %vm64, %v43, 0
    %v111 = vsel %vm64, %v44, 0
    %113 = vmatprep.subr.mxu0 0.0
    %114 = vmatpush1.msra.mxu0 %v59
    %115 = vmatprep.subr.mxu0 0.0
    %116 = vmatpush1.msra.mxu0 %v60
    %117 = vmatprep.subr.mxu0 0.0
    %118 = vmatpush1.msra.mxu0 %v61
    %119 = vmatprep.subr.mxu0 0.0
    %120 = vmatpush1.msra.mxu0 %v62
    %121 = vmatprep.subr.mxu0 0.0
    %122 = vmatpush1.msra.mxu0 %v63
    %123 = vmatprep.subr.mxu0 0.0
    %124 = vmatpush1.msra.mxu0 0.0
    %125 = vmatprep.subr.mxu0 0.0
    %126 = vmatpush1.msra.mxu0 0.0
    %127 = vmatprep.subr.mxu0 0.0
    %128 = vmatpush1.msra.mxu0 0.0
    %129 = vmatprep.subr.mxu0 0.0
    %130 = vmatpush1.msra.mxu0 0.0
    %131 = vmatprep.subr.mxu0 0.0
    %132 = vmatpush1.msra.mxu0 0.0
    %133 = vmatprep.subr.mxu0 0.0
    %134 = vmatpush1.msra.mxu0 0.0
    %135 = vmatprep.subr.mxu0 0.0
    %136 = vmatpush1.msra.mxu0 0.0
    %137 = vmatprep.subr.mxu0 0.0
    %138 = vmatpush1.msra.mxu0 0.0
    %139 = vmatprep.subr.mxu0 0.0
    %140 = vmatpush1.msra.mxu0 0.0
    %141 = vmatprep.subr.mxu0 0.0
    %142 = vmatpush1.msra.mxu0 0.0
    %143 = vmatprep.subr.mxu0 0.0
    %144 = vmatpush1.msra.mxu0 0.0
    %145 = vmatprep.subr.mxu0 0.0
    %146 = vmatpush1.msra.mxu0 0.0
    %147 = vmatprep.subr.mxu0 0.0
    %148 = vmatpush1.msra.mxu0 0.0
    %149 = vmatprep.subr.mxu0 0.0
    %150 = vmatpush1.msra.mxu0 0.0
    %151 = vmatprep.subr.mxu0 0.0
    %152 = vmatpush1.msra.mxu0 0.0
    %153 = vmatprep.subr.mxu0 0.0
    %154 = vmatpush1.msra.mxu0 0.0
    %155 = vmatprep.subr.mxu0 0.0
    %156 = vmatpush1.msra.mxu0 0.0
    %157 = vmatprep.subr.mxu0 0.0
    %158 = vmatpush1.msra.mxu0 0.0
    %159 = vmatprep.subr.mxu0 0.0
    %160 = vmatpush1.msra.mxu0 0.0
    %161 = vmatprep.subr.mxu0 0.0
    %162 = vmatpush1.msra.mxu0 0.0
    %163 = vmatprep.subr.mxu0 0.0
    %164 = vmatpush1.msra.mxu0 0.0
    %165 = vmatprep.subr.mxu0 0.0
    %166 = vmatpush1.msra.mxu0 0.0
    %167 = vmatprep.subr.mxu0 0.0
    %168 = vmatpush1.msra.mxu0 0.0
    %169 = vmatprep.subr.mxu0 0.0
    %170 = vmatpush1.msra.mxu0 0.0
    %171 = vmatprep.subr.mxu0 0.0
    %172 = vmatpush1.msra.mxu0 0.0
    %173 = vmatprep.subr.mxu0 0.0
    %174 = vmatpush1.msra.mxu0 0.0
    %175 = vmatprep.subr.mxu0 0.0
    %176 = vmatpush1.msra.mxu0 0.0
    %177 = vmatprep.mubr.f32.mxu0 0.0
    %178 = vmatmul.mubr.f32.gmra.mrb[0].mxu0 %v66
    %v179 = vpop.f32.mrb[0].mxu0
    %v180 = vadd.f32 0.0, %v179
    %v181 = vpop.f32.mrb[0].mxu0
    %182 = vmatprep.mubr.f32.mxu0 0.0
    %183 = vmatmul.mubr.f32.gmra.mrb[0].mxu0 %v69
    %v184 = vpop.f32.mrb[0].mxu0
    %v185 = vadd.f32 0.0, %v184
    %v186 = vpop.f32.mrb[0].mxu0
    %187 = vmatprep.mubr.f32.mxu0 0.0
    %188 = vmatmul.mubr.f32.gmra.mrb[0].mxu0 %v72
    %v189 = vpop.f32.mrb[0].mxu0
    %v190 = vadd.f32 0.0, %v189
    %v191 = vpop.f32.mrb[0].mxu0
    %192 = vmatprep.mubr.f32.mxu0 0.0
    %193 = vmatmul.mubr.f32.gmra.mrb[0].mxu0 %v75
    %v194 = vpop.f32.mrb[0].mxu0
    %v195 = vadd.f32 0.0, %v194
    %v196 = vpop.f32.mrb[0].mxu0
    %197 = vmatprep.mubr.f32.mxu0 0.0
    %198 = vmatmul.mubr.f32.gmra.mrb[0].mxu0 %v78
    %v199 = vpop.f32.mrb[0].mxu0
    %v200 = vadd.f32 0.0, %v199
    %v201 = vpop.f32.mrb[0].mxu0
    %202 = vmatprep.mubr.f32.mxu0 0.0
    %203 = vmatmul.mubr.f32.gmra.mrb[0].mxu0 %v81
    %v204 = vpop.f32.mrb[0].mxu0
    %v205 = vadd.f32 0.0, %v204
    %v206 = vpop.f32.mrb[0].mxu0
    %207 = vmatprep.mubr.f32.mxu0 0.0
    %208 = vmatmul.mubr.f32.gmra.mrb[0].mxu0 %v84
    %v209 = vpop.f32.mrb[0].mxu0
    %v210 = vadd.f32 0.0, %v209
    %v211 = vpop.f32.mrb[0].mxu0
    %212 = vmatprep.mubr.f32.mxu0 0.0
    %213 = vmatmul.mubr.f32.gmra.mrb[0].mxu0 %v87
    %v214 = vpop.f32.mrb[0].mxu0
    %v215 = vadd.f32 0.0, %v214
    %v216 = vpop.f32.mrb[0].mxu0
    %217 = vmatprep.mubr.f32.mxu0 0.0
    %218 = vmatmul.mubr.f32.gmra.mrb[0].mxu0 %v90
    %v219 = vpop.f32.mrb[0].mxu0
    %v220 = vadd.f32 0.0, %v219
    %v221 = vpop.f32.mrb[0].mxu0
    %222 = vmatprep.mubr.f32.mxu0 0.0
    %223 = vmatmul.mubr.f32.gmra.mrb[0].mxu0 %v93
    %v224 = vpop.f32.mrb[0].mxu0
    %v225 = vadd.f32 0.0, %v224
    %v226 = vpop.f32.mrb[0].mxu0
    %227 = vmatprep.mubr.f32.mxu0 0.0
    %228 = vmatmul.mubr.f32.gmra.mrb[0].mxu0 %v96
    %v229 = vpop.f32.mrb[0].mxu0
    %v230 = vadd.f32 0.0, %v229
    %v231 = vpop.f32.mrb[0].mxu0
    %232 = vmatprep.mubr.f32.mxu0 0.0
    %233 = vmatmul.mubr.f32.gmra.mrb[0].mxu0 %v99
    %v234 = vpop.f32.mrb[0].mxu0
    %v235 = vadd.f32 0.0, %v234
    %v236 = vpop.f32.mrb[0].mxu0
    %237 = vmatprep.mubr.f32.mxu0 0.0
    %238 = vmatmul.mubr.f32.gmra.mrb[0].mxu0 %v102
    %v239 = vpop.f32.mrb[0].mxu0
    %v240 = vadd.f32 0.0, %v239
    %v241 = vpop.f32.mrb[0].mxu0
    %242 = vmatprep.mubr.f32.mxu0 0.0
    %243 = vmatmul.mubr.f32.gmra.mrb[0].mxu0 %v105
    %v244 = vpop.f32.mrb[0].mxu0
    %v245 = vadd.f32 0.0, %v244
    %v246 = vpop.f32.mrb[0].mxu0
    %247 = vmatprep.mubr.f32.mxu0 0.0
    %248 = vmatmul.mubr.f32.gmra.mrb[0].mxu0 %v108
    %v249 = vpop.f32.mrb[0].mxu0
    %v250 = vadd.f32 0.0, %v249
    %v251 = vpop.f32.mrb[0].mxu0
    %252 = vmatprep.mubr.f32.mxu0 0.0
    %253 = vmatmul.mubr.f32.gmra.mrb[0].mxu0 %v111
    %v254 = vpop.f32.mrb[0].mxu0
    %v255 = vadd.f32 0.0, %v254
    %v256 = vpop.f32.mrb[0].mxu0
    %257 = vdwg.mxu0
    %258 = vst [vmem:[#allocation2] sm:$0xff] %v180
    %259 = vst [vmem:[#allocation2 + $0x8] sm:$0xff] %v185
    %260 = vst [vmem:[#allocation2 + $0x10] sm:$0xff] %v190
    %261 = vst [vmem:[#allocation2 + $0x18] sm:$0xff] %v195
    %262 = vst [vmem:[#allocation2 + $0x20] sm:$0xff] %v200
    %263 = vst [vmem:[#allocation2 + $0x28] sm:$0xff] %v205
    %264 = vst [vmem:[#allocation2 + $0x30] sm:$0xff] %v210
    %265 = vst [vmem:[#allocation2 + $0x38] sm:$0xff] %v215
    %266 = vst [vmem:[#allocation2 + $0x40] sm:$0xff] %v220
    %267 = vst [vmem:[#allocation2 + $0x48] sm:$0xff] %v225
    %268 = vst [vmem:[#allocation2 + $0x50] sm:$0xff] %v230
    %269 = vst [vmem:[#allocation2 + $0x58] sm:$0xff] %v235
    %270 = vst [vmem:[#allocation2 + $0x60] sm:$0xff] %v240
    %271 = vst [vmem:[#allocation2 + $0x68] sm:$0xff] %v245
    %272 = vst [vmem:[#allocation2 + $0x70] sm:$0xff] %v250
    %273 = vst [vmem:[#allocation2 + $0x78] sm:$0xff] %v255
    %v274 = vlaneseq
    %v275 = vshrl.u32 %v274, 7
    %v276 = vsub.s32 1, %v275
    %v277 = vrot.slane %v22, %v276
    %vm278 = vcmp.eq.s32.totalorder %v24, %v277
    %vm279 = vcmp.eq.s32.totalorder %v25, %v277
    %vm280 = vcmp.eq.s32.totalorder %v26, %v277
    %vm281 = vcmp.eq.s32.totalorder %v27, %v277
    %vm282 = vcmp.eq.s32.totalorder %v28, %v277
    %v283 = vsel %vm278, 1, 0
    %v284 = vsel %vm279, 1, 0
    %v285 = vsel %vm280, 1, 0
    %v286 = vsel %vm281, 1, 0
    %v287 = vsel %vm282, 1, 0
    %v288 = vcvt.s32.f32 %v283
    %v289 = vcvt.s32.f32 %v284
    %v290 = vcvt.s32.f32 %v285
    %v291 = vcvt.s32.f32 %v286
    %v292 = vcvt.s32.f32 %v287
    %293 = vmatprep.subr.mxu0 0.0
    %294 = vmatpush1.msra.mxu0 %v288
    %295 = vmatprep.subr.mxu0 0.0
    %296 = vmatpush1.msra.mxu0 %v289
    %297 = vmatprep.subr.mxu0 0.0
    %298 = vmatpush1.msra.mxu0 %v290
    %299 = vmatprep.subr.mxu0 0.0
    %300 = vmatpush1.msra.mxu0 %v291
    %301 = vmatprep.subr.mxu0 0.0
    %302 = vmatpush1.msra.mxu0 %v292
    %303 = vmatprep.subr.mxu0 0.0
    %304 = vmatpush1.msra.mxu0 0.0
    %305 = vmatprep.subr.mxu0 0.0
    %306 = vmatpush1.msra.mxu0 0.0
    %307 = vmatprep.subr.mxu0 0.0
    %308 = vmatpush1.msra.mxu0 0.0
    %309 = vmatprep.subr.mxu0 0.0
    %310 = vmatpush1.msra.mxu0 0.0
    %311 = vmatprep.subr.mxu0 0.0
    %312 = vmatpush1.msra.mxu0 0.0
    %313 = vmatprep.subr.mxu0 0.0
    %314 = vmatpush1.msra.mxu0 0.0
    %315 = vmatprep.subr.mxu0 0.0
    %316 = vmatpush1.msra.mxu0 0.0
    %317 = vmatprep.subr.mxu0 0.0
    %318 = vmatpush1.msra.mxu0 0.0
    %319 = vmatprep.subr.mxu0 0.0
    %320 = vmatpush1.msra.mxu0 0.0
    %321 = vmatprep.subr.mxu0 0.0
    %322 = vmatpush1.msra.mxu0 0.0
    %323 = vmatprep.subr.mxu0 0.0
    %324 = vmatpush1.msra.mxu0 0.0
    %325 = vmatprep.subr.mxu0 0.0
    %326 = vmatpush1.msra.mxu0 0.0
    %327 = vmatprep.subr.mxu0 0.0
    %328 = vmatpush1.msra.mxu0 0.0
    %329 = vmatprep.subr.mxu0 0.0
    %330 = vmatpush1.msra.mxu0 0.0
    %331 = vmatprep.subr.mxu0 0.0
    %332 = vmatpush1.msra.mxu0 0.0
    %333 = vmatprep.subr.mxu0 0.0
    %334 = vmatpush1.msra.mxu0 0.0
    %335 = vmatprep.subr.mxu0 0.0
    %336 = vmatpush1.msra.mxu0 0.0
    %337 = vmatprep.subr.mxu0 0.0
    %338 = vmatpush1.msra.mxu0 0.0
    %339 = vmatprep.subr.mxu0 0.0
    %340 = vmatpush1.msra.mxu0 0.0
    %341 = vmatprep.subr.mxu0 0.0
    %342 = vmatpush1.msra.mxu0 0.0
    %343 = vmatprep.subr.mxu0 0.0
    %344 = vmatpush1.msra.mxu0 0.0
    %345 = vmatprep.subr.mxu0 0.0
    %346 = vmatpush1.msra.mxu0 0.0
    %347 = vmatprep.subr.mxu0 0.0
    %348 = vmatpush1.msra.mxu0 0.0
    %349 = vmatprep.subr.mxu0 0.0
    %350 = vmatpush1.msra.mxu0 0.0
    %351 = vmatprep.subr.mxu0 0.0
    %352 = vmatpush1.msra.mxu0 0.0
    %353 = vmatprep.subr.mxu0 0.0
    %354 = vmatpush1.msra.mxu0 0.0
    %355 = vmatprep.subr.mxu0 0.0
    %356 = vmatpush1.msra.mxu0 0.0
    %357 = vmatprep.mubr.f32.mxu0 0.0
    %358 = vmatmul.mubr.f32.gmra.mrb[0].mxu0 %v66
    %v359 = vpop.f32.mrb[0].mxu0
    %v360 = vadd.f32 0.0, %v359
    %v361 = vpop.f32.mrb[0].mxu0
    %362 = vmatprep.mubr.f32.mxu0 0.0
    %363 = vmatmul.mubr.f32.gmra.mrb[0].mxu0 %v69
    %v364 = vpop.f32.mrb[0].mxu0
    %v365 = vadd.f32 0.0, %v364
    %v366 = vpop.f32.mrb[0].mxu0
    %367 = vmatprep.mubr.f32.mxu0 0.0
    %368 = vmatmul.mubr.f32.gmra.mrb[0].mxu0 %v72
    %v369 = vpop.f32.mrb[0].mxu0
    %v370 = vadd.f32 0.0, %v369
    %v371 = vpop.f32.mrb[0].mxu0
    %372 = vmatprep.mubr.f32.mxu0 0.0
    %373 = vmatmul.mubr.f32.gmra.mrb[0].mxu0 %v75
    %v374 = vpop.f32.mrb[0].mxu0
    %v375 = vadd.f32 0.0, %v374
    %v376 = vpop.f32.mrb[0].mxu0
    %377 = vmatprep.mubr.f32.mxu0 0.0
    %378 = vmatmul.mubr.f32.gmra.mrb[0].mxu0 %v78
    %v379 = vpop.f32.mrb[0].mxu0
    %v380 = vadd.f32 0.0, %v379
    %v381 = vpop.f32.mrb[0].mxu0
    %382 = vmatprep.mubr.f32.mxu0 0.0
    %383 = vmatmul.mubr.f32.gmra.mrb[0].mxu0 %v81
    %v384 = vpop.f32.mrb[0].mxu0
    %v385 = vadd.f32 0.0, %v384
    %v386 = vpop.f32.mrb[0].mxu0
    %387 = vmatprep.mubr.f32.mxu0 0.0
    %388 = vmatmul.mubr.f32.gmra.mrb[0].mxu0 %v84
    %v389 = vpop.f32.mrb[0].mxu0
    %v390 = vadd.f32 0.0, %v389
    %v391 = vpop.f32.mrb[0].mxu0
    %392 = vmatprep.mubr.f32.mxu0 0.0
    %393 = vmatmul.mubr.f32.gmra.mrb[0].mxu0 %v87
    %v394 = vpop.f32.mrb[0].mxu0
    %v395 = vadd.f32 0.0, %v394
    %v396 = vpop.f32.mrb[0].mxu0
    %397 = vmatprep.mubr.f32.mxu0 0.0
    %398 = vmatmul.mubr.f32.gmra.mrb[0].mxu0 %v90
    %v399 = vpop.f32.mrb[0].mxu0
    %v400 = vadd.f32 0.0, %v399
    %v401 = vpop.f32.mrb[0].mxu0
    %402 = vmatprep.mubr.f32.mxu0 0.0
    %403 = vmatmul.mubr.f32.gmra.mrb[0].mxu0 %v93
    %v404 = vpop.f32.mrb[0].mxu0
    %v405 = vadd.f32 0.0, %v404
    %v406 = vpop.f32.mrb[0].mxu0
    %407 = vmatprep.mubr.f32.mxu0 0.0
    %408 = vmatmul.mubr.f32.gmra.mrb[0].mxu0 %v96
    %v409 = vpop.f32.mrb[0].mxu0
    %v410 = vadd.f32 0.0, %v409
    %v411 = vpop.f32.mrb[0].mxu0
    %412 = vmatprep.mubr.f32.mxu0 0.0
    %413 = vmatmul.mubr.f32.gmra.mrb[0].mxu0 %v99
    %v414 = vpop.f32.mrb[0].mxu0
    %v415 = vadd.f32 0.0, %v414
    %v416 = vpop.f32.mrb[0].mxu0
    %417 = vmatprep.mubr.f32.mxu0 0.0
    %418 = vmatmul.mubr.f32.gmra.mrb[0].mxu0 %v102
    %v419 = vpop.f32.mrb[0].mxu0
    %v420 = vadd.f32 0.0, %v419
    %v421 = vpop.f32.mrb[0].mxu0
    %422 = vmatprep.mubr.f32.mxu0 0.0
    %423 = vmatmul.mubr.f32.gmra.mrb[0].mxu0 %v105
    %v424 = vpop.f32.mrb[0].mxu0
    %v425 = vadd.f32 0.0, %v424
    %v426 = vpop.f32.mrb[0].mxu0
    %427 = vmatprep.mubr.f32.mxu0 0.0
    %428 = vmatmul.mubr.f32.gmra.mrb[0].mxu0 %v108
    %v429 = vpop.f32.mrb[0].mxu0
    %v430 = vadd.f32 0.0, %v429
    %v431 = vpop.f32.mrb[0].mxu0
    %432 = vmatprep.mubr.f32.mxu0 0.0
    %433 = vmatmul.mubr.f32.gmra.mrb[0].mxu0 %v111
    %v434 = vpop.f32.mrb[0].mxu0
    %v435 = vadd.f32 0.0, %v434
    %v436 = vpop.f32.mrb[0].mxu0
    %437 = vdwg.mxu0
    %s438 = scalar_lea.vmem [#allocation2], 128
    %439 = vst [vmem:[%s438] sm:$0xff] %v360
    %440 = vst [vmem:[%s438 + $0x8] sm:$0xff] %v365
    %441 = vst [vmem:[%s438 + $0x10] sm:$0xff] %v370
    %442 = vst [vmem:[%s438 + $0x18] sm:$0xff] %v375
    %443 = vst [vmem:[%s438 + $0x20] sm:$0xff] %v380
    %444 = vst [vmem:[%s438 + $0x28] sm:$0xff] %v385
    %445 = vst [vmem:[%s438 + $0x30] sm:$0xff] %v390
    %446 = vst [vmem:[%s438 + $0x38] sm:$0xff] %v395
    %447 = vst [vmem:[%s438 + $0x40] sm:$0xff] %v400
    %448 = vst [vmem:[%s438 + $0x48] sm:$0xff] %v405
    %449 = vst [vmem:[%s438 + $0x50] sm:$0xff] %v410
    %450 = vst [vmem:[%s438 + $0x58] sm:$0xff] %v415
    %451 = vst [vmem:[%s438 + $0x60] sm:$0xff] %v420
    %452 = vst [vmem:[%s438 + $0x68] sm:$0xff] %v425
    %453 = vst [vmem:[%s438 + $0x70] sm:$0xff] %v430
    %454 = vst [vmem:[%s438 + $0x78] sm:$0xff] %v435
    %v455 = vlaneseq
    %v456 = vshrl.u32 %v455, 7
    %v457 = vsub.s32 2, %v456
    %v458 = vrot.slane %v22, %v457
    %vm459 = vcmp.eq.s32.totalorder %v24, %v458
    %vm460 = vcmp.eq.s32.totalorder %v25, %v458
    %vm461 = vcmp.eq.s32.totalorder %v26, %v458
    %vm462 = vcmp.eq.s32.totalorder %v27, %v458
    %vm463 = vcmp.eq.s32.totalorder %v28, %v458
    %v464 = vsel %vm459, 1, 0
    %v465 = vsel %vm460, 1, 0
    %v466 = vsel %vm461, 1, 0
    %v467 = vsel %vm462, 1, 0
    %v468 = vsel %vm463, 1, 0
    %v469 = vcvt.s32.f32 %v464
    %v470 = vcvt.s32.f32 %v465
    %v471 = vcvt.s32.f32 %v466
    %v472 = vcvt.s32.f32 %v467
    %v473 = vcvt.s32.f32 %v468
    %474 = vmatprep.subr.mxu0 0.0
    %475 = vmatpush1.msra.mxu0 %v469
    %476 = vmatprep.subr.mxu0 0.0
    %477 = vmatpush1.msra.mxu0 %v470
    %478 = vmatprep.subr.mxu0 0.0
    %479 = vmatpush1.msra.mxu0 %v471
    %480 = vmatprep.subr.mxu0 0.0
    %481 = vmatpush1.msra.mxu0 %v472
    %482 = vmatprep.subr.mxu0 0.0
    %483 = vmatpush1.msra.mxu0 %v473
    %484 = vmatprep.subr.mxu0 0.0
    %485 = vmatpush1.msra.mxu0 0.0
    %486 = vmatprep.subr.mxu0 0.0
    %487 = vmatpush1.msra.mxu0 0.0
    %488 = vmatprep.subr.mxu0 0.0
    %489 = vmatpush1.msra.mxu0 0.0
    %490 = vmatprep.subr.mxu0 0.0
    %491 = vmatpush1.msra.mxu0 0.0
    %492 = vmatprep.subr.mxu0 0.0
    %493 = vmatpush1.msra.mxu0 0.0
    %494 = vmatprep.subr.mxu0 0.0
    %495 = vmatpush1.msra.mxu0 0.0
    %496 = vmatprep.subr.mxu0 0.0
    %497 = vmatpush1.msra.mxu0 0.0
    %498 = vmatprep.subr.mxu0 0.0
    %499 = vmatpush1.msra.mxu0 0.0
    %500 = vmatprep.subr.mxu0 0.0
    %501 = vmatpush1.msra.mxu0 0.0
    %502 = vmatprep.subr.mxu0 0.0
    %503 = vmatpush1.msra.mxu0 0.0
    %504 = vmatprep.subr.mxu0 0.0
    %505 = vmatpush1.msra.mxu0 0.0
    %506 = vmatprep.subr.mxu0 0.0
    %507 = vmatpush1.msra.mxu0 0.0
    %508 = vmatprep.subr.mxu0 0.0
    %509 = vmatpush1.msra.mxu0 0.0
    %510 = vmatprep.subr.mxu0 0.0
    %511 = vmatpush1.msra.mxu0 0.0
    %512 = vmatprep.subr.mxu0 0.0
    %513 = vmatpush1.msra.mxu0 0.0
    %514 = vmatprep.subr.mxu0 0.0
    %515 = vmatpush1.msra.mxu0 0.0
    %516 = vmatprep.subr.mxu0 0.0
    %517 = vmatpush1.msra.mxu0 0.0
    %518 = vmatprep.subr.mxu0 0.0
    %519 = vmatpush1.msra.mxu0 0.0
    %520 = vmatprep.subr.mxu0 0.0
    %521 = vmatpush1.msra.mxu0 0.0
    %522 = vmatprep.subr.mxu0 0.0
    %523 = vmatpush1.msra.mxu0 0.0
    %524 = vmatprep.subr.mxu0 0.0
    %525 = vmatpush1.msra.mxu0 0.0
    %526 = vmatprep.subr.mxu0 0.0
    %527 = vmatpush1.msra.mxu0 0.0
    %528 = vmatprep.subr.mxu0 0.0
    %529 = vmatpush1.msra.mxu0 0.0
    %530 = vmatprep.subr.mxu0 0.0
    %531 = vmatpush1.msra.mxu0 0.0
    %532 = vmatprep.subr.mxu0 0.0
    %533 = vmatpush1.msra.mxu0 0.0
    %534 = vmatprep.subr.mxu0 0.0
    %535 = vmatpush1.msra.mxu0 0.0
    %536 = vmatprep.subr.mxu0 0.0
    %537 = vmatpush1.msra.mxu0 0.0
    %538 = vmatprep.mubr.f32.mxu0 0.0
    %539 = vmatmul.mubr.f32.gmra.mrb[0].mxu0 %v66
    %v540 = vpop.f32.mrb[0].mxu0
    %v541 = vadd.f32 0.0, %v540
    %v542 = vpop.f32.mrb[0].mxu0
    %543 = vmatprep.mubr.f32.mxu0 0.0
    %544 = vmatmul.mubr.f32.gmra.mrb[0].mxu0 %v69
    %v545 = vpop.f32.mrb[0].mxu0
    %v546 = vadd.f32 0.0, %v545
    %v547 = vpop.f32.mrb[0].mxu0
    %548 = vmatprep.mubr.f32.mxu0 0.0
    %549 = vmatmul.mubr.f32.gmra.mrb[0].mxu0 %v72
    %v550 = vpop.f32.mrb[0].mxu0
    %v551 = vadd.f32 0.0, %v550
    %v552 = vpop.f32.mrb[0].mxu0
    %553 = vmatprep.mubr.f32.mxu0 0.0
    %554 = vmatmul.mubr.f32.gmra.mrb[0].mxu0 %v75
    %v555 = vpop.f32.mrb[0].mxu0
    %v556 = vadd.f32 0.0, %v555
    %v557 = vpop.f32.mrb[0].mxu0
    %558 = vmatprep.mubr.f32.mxu0 0.0
    %559 = vmatmul.mubr.f32.gmra.mrb[0].mxu0 %v78
    %v560 = vpop.f32.mrb[0].mxu0
    %v561 = vadd.f32 0.0, %v560
    %v562 = vpop.f32.mrb[0].mxu0
    %563 = vmatprep.mubr.f32.mxu0 0.0
    %564 = vmatmul.mubr.f32.gmra.mrb[0].mxu0 %v81
    %v565 = vpop.f32.mrb[0].mxu0
    %v566 = vadd.f32 0.0, %v565
    %v567 = vpop.f32.mrb[0].mxu0
    %568 = vmatprep.mubr.f32.mxu0 0.0
    %569 = vmatmul.mubr.f32.gmra.mrb[0].mxu0 %v84
    %v570 = vpop.f32.mrb[0].mxu0
    %v571 = vadd.f32 0.0, %v570
    %v572 = vpop.f32.mrb[0].mxu0
    %573 = vmatprep.mubr.f32.mxu0 0.0
    %574 = vmatmul.mubr.f32.gmra.mrb[0].mxu0 %v87
    %v575 = vpop.f32.mrb[0].mxu0
    %v576 = vadd.f32 0.0, %v575
    %v577 = vpop.f32.mrb[0].mxu0
    %578 = vmatprep.mubr.f32.mxu0 0.0
    %579 = vmatmul.mubr.f32.gmra.mrb[0].mxu0 %v90
    %v580 = vpop.f32.mrb[0].mxu0
    %v581 = vadd.f32 0.0, %v580
    %v582 = vpop.f32.mrb[0].mxu0
    %583 = vmatprep.mubr.f32.mxu0 0.0
    %584 = vmatmul.mubr.f32.gmra.mrb[0].mxu0 %v93
    %v585 = vpop.f32.mrb[0].mxu0
    %v586 = vadd.f32 0.0, %v585
    %v587 = vpop.f32.mrb[0].mxu0
    %588 = vmatprep.mubr.f32.mxu0 0.0
    %589 = vmatmul.mubr.f32.gmra.mrb[0].mxu0 %v96
    %v590 = vpop.f32.mrb[0].mxu0
    %v591 = vadd.f32 0.0, %v590
    %v592 = vpop.f32.mrb[0].mxu0
    %593 = vmatprep.mubr.f32.mxu0 0.0
    %594 = vmatmul.mubr.f32.gmra.mrb[0].mxu0 %v99
    %v595 = vpop.f32.mrb[0].mxu0
    %v596 = vadd.f32 0.0, %v595
    %v597 = vpop.f32.mrb[0].mxu0
    %598 = vmatprep.mubr.f32.mxu0 0.0
    %599 = vmatmul.mubr.f32.gmra.mrb[0].mxu0 %v102
    %v600 = vpop.f32.mrb[0].mxu0
    %v601 = vadd.f32 0.0, %v600
    %v602 = vpop.f32.mrb[0].mxu0
    %603 = vmatprep.mubr.f32.mxu0 0.0
    %604 = vmatmul.mubr.f32.gmra.mrb[0].mxu0 %v105
    %v605 = vpop.f32.mrb[0].mxu0
    %v606 = vadd.f32 0.0, %v605
    %v607 = vpop.f32.mrb[0].mxu0
    %608 = vmatprep.mubr.f32.mxu0 0.0
    %609 = vmatmul.mubr.f32.gmra.mrb[0].mxu0 %v108
    %v610 = vpop.f32.mrb[0].mxu0
    %v611 = vadd.f32 0.0, %v610
    %v612 = vpop.f32.mrb[0].mxu0
    %613 = vmatprep.mubr.f32.mxu0 0.0
    %614 = vmatmul.mubr.f32.gmra.mrb[0].mxu0 %v111
    %v615 = vpop.f32.mrb[0].mxu0
    %v616 = vadd.f32 0.0, %v615
    %v617 = vpop.f32.mrb[0].mxu0
    %618 = vdwg.mxu0
    %s619 = scalar_lea.vmem [#allocation2], 256
    %620 = vst [vmem:[%s619] sm:$0xff] %v541
    %621 = vst [vmem:[%s619 + $0x8] sm:$0xff] %v546
    %622 = vst [vmem:[%s619 + $0x10] sm:$0xff] %v551
    %623 = vst [vmem:[%s619 + $0x18] sm:$0xff] %v556
    %624 = vst [vmem:[%s619 + $0x20] sm:$0xff] %v561
    %625 = vst [vmem:[%s619 + $0x28] sm:$0xff] %v566
    %626 = vst [vmem:[%s619 + $0x30] sm:$0xff] %v571
    %627 = vst [vmem:[%s619 + $0x38] sm:$0xff] %v576
    %628 = vst [vmem:[%s619 + $0x40] sm:$0xff] %v581
    %629 = vst [vmem:[%s619 + $0x48] sm:$0xff] %v586
    %630 = vst [vmem:[%s619 + $0x50] sm:$0xff] %v591
    %631 = vst [vmem:[%s619 + $0x58] sm:$0xff] %v596
    %632 = vst [vmem:[%s619 + $0x60] sm:$0xff] %v601
    %633 = vst [vmem:[%s619 + $0x68] sm:$0xff] %v606
    %634 = vst [vmem:[%s619 + $0x70] sm:$0xff] %v611
    %635 = vst [vmem:[%s619 + $0x78] sm:$0xff] %v616
    %v636 = vlaneseq
    %v637 = vshrl.u32 %v636, 7
    %v638 = vsub.s32 3, %v637
    %v639 = vrot.slane %v22, %v638
    %vm640 = vcmp.eq.s32.totalorder %v24, %v639
    %vm641 = vcmp.eq.s32.totalorder %v25, %v639
    %vm642 = vcmp.eq.s32.totalorder %v26, %v639
    %vm643 = vcmp.eq.s32.totalorder %v27, %v639
    %vm644 = vcmp.eq.s32.totalorder %v28, %v639
    %v645 = vsel %vm640, 1, 0
    %v646 = vsel %vm641, 1, 0
    %v647 = vsel %vm642, 1, 0
    %v648 = vsel %vm643, 1, 0
    %v649 = vsel %vm644, 1, 0
    %v650 = vcvt.s32.f32 %v645
    %v651 = vcvt.s32.f32 %v646
    %v652 = vcvt.s32.f32 %v647
    %v653 = vcvt.s32.f32 %v648
    %v654 = vcvt.s32.f32 %v649
    %655 = vmatprep.subr.mxu0 0.0
    %656 = vmatpush1.msra.mxu0 %v650
    %657 = vmatprep.subr.mxu0 0.0
    %658 = vmatpush1.msra.mxu0 %v651
    %659 = vmatprep.subr.mxu0 0.0
    %660 = vmatpush1.msra.mxu0 %v652
    %661 = vmatprep.subr.mxu0 0.0
    %662 = vmatpush1.msra.mxu0 %v653
    %663 = vmatprep.subr.mxu0 0.0
    %664 = vmatpush1.msra.mxu0 %v654
    %665 = vmatprep.subr.mxu0 0.0
    %666 = vmatpush1.msra.mxu0 0.0
    %667 = vmatprep.subr.mxu0 0.0
    %668 = vmatpush1.msra.mxu0 0.0
    %669 = vmatprep.subr.mxu0 0.0
    %670 = vmatpush1.msra.mxu0 0.0
    %671 = vmatprep.subr.mxu0 0.0
    %672 = vmatpush1.msra.mxu0 0.0
    %673 = vmatprep.subr.mxu0 0.0
    %674 = vmatpush1.msra.mxu0 0.0
    %675 = vmatprep.subr.mxu0 0.0
    %676 = vmatpush1.msra.mxu0 0.0
    %677 = vmatprep.subr.mxu0 0.0
    %678 = vmatpush1.msra.mxu0 0.0
    %679 = vmatprep.subr.mxu0 0.0
    %680 = vmatpush1.msra.mxu0 0.0
    %681 = vmatprep.subr.mxu0 0.0
    %682 = vmatpush1.msra.mxu0 0.0
    %683 = vmatprep.subr.mxu0 0.0
    %684 = vmatpush1.msra.mxu0 0.0
    %685 = vmatprep.subr.mxu0 0.0
    %686 = vmatpush1.msra.mxu0 0.0
    %687 = vmatprep.subr.mxu0 0.0
    %688 = vmatpush1.msra.mxu0 0.0
    %689 = vmatprep.subr.mxu0 0.0
    %690 = vmatpush1.msra.mxu0 0.0
    %691 = vmatprep.subr.mxu0 0.0
    %692 = vmatpush1.msra.mxu0 0.0
    %693 = vmatprep.subr.mxu0 0.0
    %694 = vmatpush1.msra.mxu0 0.0
    %695 = vmatprep.subr.mxu0 0.0
    %696 = vmatpush1.msra.mxu0 0.0
    %697 = vmatprep.subr.mxu0 0.0
    %698 = vmatpush1.msra.mxu0 0.0
    %699 = vmatprep.subr.mxu0 0.0
    %700 = vmatpush1.msra.mxu0 0.0
    %701 = vmatprep.subr.mxu0 0.0
    %702 = vmatpush1.msra.mxu0 0.0
    %703 = vmatprep.subr.mxu0 0.0
    %704 = vmatpush1.msra.mxu0 0.0
    %705 = vmatprep.subr.mxu0 0.0
    %706 = vmatpush1.msra.mxu0 0.0
    %707 = vmatprep.subr.mxu0 0.0
    %708 = vmatpush1.msra.mxu0 0.0
    %709 = vmatprep.subr.mxu0 0.0
    %710 = vmatpush1.msra.mxu0 0.0
    %711 = vmatprep.subr.mxu0 0.0
    %712 = vmatpush1.msra.mxu0 0.0
    %713 = vmatprep.subr.mxu0 0.0
    %714 = vmatpush1.msra.mxu0 0.0
    %715 = vmatprep.subr.mxu0 0.0
    %716 = vmatpush1.msra.mxu0 0.0
    %717 = vmatprep.subr.mxu0 0.0
    %718 = vmatpush1.msra.mxu0 0.0
    %719 = vmatprep.mubr.f32.mxu0 0.0
    %720 = vmatmul.mubr.f32.gmra.mrb[0].mxu0 %v66
    %v721 = vpop.f32.mrb[0].mxu0
    %v722 = vadd.f32 0.0, %v721
    %v723 = vpop.f32.mrb[0].mxu0
    %724 = vmatprep.mubr.f32.mxu0 0.0
    %725 = vmatmul.mubr.f32.gmra.mrb[0].mxu0 %v69
    %v726 = vpop.f32.mrb[0].mxu0
    %v727 = vadd.f32 0.0, %v726
    %v728 = vpop.f32.mrb[0].mxu0
    %729 = vmatprep.mubr.f32.mxu0 0.0
    %730 = vmatmul.mubr.f32.gmra.mrb[0].mxu0 %v72
    %v731 = vpop.f32.mrb[0].mxu0
    %v732 = vadd.f32 0.0, %v731
    %v733 = vpop.f32.mrb[0].mxu0
    %734 = vmatprep.mubr.f32.mxu0 0.0
    %735 = vmatmul.mubr.f32.gmra.mrb[0].mxu0 %v75
    %v736 = vpop.f32.mrb[0].mxu0
    %v737 = vadd.f32 0.0, %v736
    %v738 = vpop.f32.mrb[0].mxu0
    %739 = vmatprep.mubr.f32.mxu0 0.0
    %740 = vmatmul.mubr.f32.gmra.mrb[0].mxu0 %v78
    %v741 = vpop.f32.mrb[0].mxu0
    %v742 = vadd.f32 0.0, %v741
    %v743 = vpop.f32.mrb[0].mxu0
    %744 = vmatprep.mubr.f32.mxu0 0.0
    %745 = vmatmul.mubr.f32.gmra.mrb[0].mxu0 %v81
    %v746 = vpop.f32.mrb[0].mxu0
    %v747 = vadd.f32 0.0, %v746
    %v748 = vpop.f32.mrb[0].mxu0
    %749 = vmatprep.mubr.f32.mxu0 0.0
    %750 = vmatmul.mubr.f32.gmra.mrb[0].mxu0 %v84
    %v751 = vpop.f32.mrb[0].mxu0
    %v752 = vadd.f32 0.0, %v751
    %v753 = vpop.f32.mrb[0].mxu0
    %754 = vmatprep.mubr.f32.mxu0 0.0
    %755 = vmatmul.mubr.f32.gmra.mrb[0].mxu0 %v87
    %v756 = vpop.f32.mrb[0].mxu0
    %v757 = vadd.f32 0.0, %v756
    %v758 = vpop.f32.mrb[0].mxu0
    %759 = vmatprep.mubr.f32.mxu0 0.0
    %760 = vmatmul.mubr.f32.gmra.mrb[0].mxu0 %v90
    %v761 = vpop.f32.mrb[0].mxu0
    %v762 = vadd.f32 0.0, %v761
    %v763 = vpop.f32.mrb[0].mxu0
    %764 = vmatprep.mubr.f32.mxu0 0.0
    %765 = vmatmul.mubr.f32.gmra.mrb[0].mxu0 %v93
    %v766 = vpop.f32.mrb[0].mxu0
    %v767 = vadd.f32 0.0, %v766
    %v768 = vpop.f32.mrb[0].mxu0
    %769 = vmatprep.mubr.f32.mxu0 0.0
    %770 = vmatmul.mubr.f32.gmra.mrb[0].mxu0 %v96
    %v771 = vpop.f32.mrb[0].mxu0
    %v772 = vadd.f32 0.0, %v771
    %v773 = vpop.f32.mrb[0].mxu0
    %774 = vmatprep.mubr.f32.mxu0 0.0
    %775 = vmatmul.mubr.f32.gmra.mrb[0].mxu0 %v99
    %v776 = vpop.f32.mrb[0].mxu0
    %v777 = vadd.f32 0.0, %v776
    %v778 = vpop.f32.mrb[0].mxu0
    %779 = vmatprep.mubr.f32.mxu0 0.0
    %780 = vmatmul.mubr.f32.gmra.mrb[0].mxu0 %v102
    %v781 = vpop.f32.mrb[0].mxu0
    %v782 = vadd.f32 0.0, %v781
    %v783 = vpop.f32.mrb[0].mxu0
    %784 = vmatprep.mubr.f32.mxu0 0.0
    %785 = vmatmul.mubr.f32.gmra.mrb[0].mxu0 %v105
    %v786 = vpop.f32.mrb[0].mxu0
    %v787 = vadd.f32 0.0, %v786
    %v788 = vpop.f32.mrb[0].mxu0
    %789 = vmatprep.mubr.f32.mxu0 0.0
    %790 = vmatmul.mubr.f32.gmra.mrb[0].mxu0 %v108
    %v791 = vpop.f32.mrb[0].mxu0
    %v792 = vadd.f32 0.0, %v791
    %v793 = vpop.f32.mrb[0].mxu0
    %794 = vmatprep.mubr.f32.mxu0 0.0
    %795 = vmatmul.mubr.f32.gmra.mrb[0].mxu0 %v111
    %v796 = vpop.f32.mrb[0].mxu0
    %v797 = vadd.f32 0.0, %v796
    %v798 = vpop.f32.mrb[0].mxu0
    %799 = vdwg.mxu0
    %s800 = scalar_lea.vmem [#allocation2], 384
    %801 = vst [vmem:[%s800] sm:$0xff] %v722
    %802 = vst [vmem:[%s800 + $0x8] sm:$0xff] %v727
    %803 = vst [vmem:[%s800 + $0x10] sm:$0xff] %v732
    %804 = vst [vmem:[%s800 + $0x18] sm:$0xff] %v737
    %805 = vst [vmem:[%s800 + $0x20] sm:$0xff] %v742
    %806 = vst [vmem:[%s800 + $0x28] sm:$0xff] %v747
    %807 = vst [vmem:[%s800 + $0x30] sm:$0xff] %v752
    %808 = vst [vmem:[%s800 + $0x38] sm:$0xff] %v757
    %809 = vst [vmem:[%s800 + $0x40] sm:$0xff] %v762
    %810 = vst [vmem:[%s800 + $0x48] sm:$0xff] %v767
    %811 = vst [vmem:[%s800 + $0x50] sm:$0xff] %v772
    %812 = vst [vmem:[%s800 + $0x58] sm:$0xff] %v777
    %813 = vst [vmem:[%s800 + $0x60] sm:$0xff] %v782
    %814 = vst [vmem:[%s800 + $0x68] sm:$0xff] %v787
    %815 = vst [vmem:[%s800 + $0x70] sm:$0xff] %v792
    %816 = vst [vmem:[%s800 + $0x78] sm:$0xff] %v797
    %v817 = vlaneseq
    %v818 = vshrl.u32 %v817, 7
    %v819 = vsub.s32 4, %v818
    %v820 = vrot.slane %v22, %v819
    %vm821 = vcmp.eq.s32.totalorder %v24, %v820
    %vm822 = vcmp.eq.s32.totalorder %v25, %v820
    %vm823 = vcmp.eq.s32.totalorder %v26, %v820
    %vm824 = vcmp.eq.s32.totalorder %v27, %v820
    %vm825 = vcmp.eq.s32.totalorder %v28, %v820
    %v826 = vsel %vm821, 1, 0
    %v827 = vsel %vm822, 1, 0
    %v828 = vsel %vm823, 1, 0
    %v829 = vsel %vm824, 1, 0
    %v830 = vsel %vm825, 1, 0
    %v831 = vcvt.s32.f32 %v826
    %v832 = vcvt.s32.f32 %v827
    %v833 = vcvt.s32.f32 %v828
    %v834 = vcvt.s32.f32 %v829
    %v835 = vcvt.s32.f32 %v830
    %836 = vmatprep.subr.mxu0 0.0
    %837 = vmatpush1.msra.mxu0 %v831
    %838 = vmatprep.subr.mxu0 0.0
    %839 = vmatpush1.msra.mxu0 %v832
    %840 = vmatprep.subr.mxu0 0.0
    %841 = vmatpush1.msra.mxu0 %v833
    %842 = vmatprep.subr.mxu0 0.0
    %843 = vmatpush1.msra.mxu0 %v834
    %844 = vmatprep.subr.mxu0 0.0
    %845 = vmatpush1.msra.mxu0 %v835
    %846 = vmatprep.subr.mxu0 0.0
    %847 = vmatpush1.msra.mxu0 0.0
    %848 = vmatprep.subr.mxu0 0.0
    %849 = vmatpush1.msra.mxu0 0.0
    %850 = vmatprep.subr.mxu0 0.0
    %851 = vmatpush1.msra.mxu0 0.0
    %852 = vmatprep.subr.mxu0 0.0
    %853 = vmatpush1.msra.mxu0 0.0
    %854 = vmatprep.subr.mxu0 0.0
    %855 = vmatpush1.msra.mxu0 0.0
    %856 = vmatprep.subr.mxu0 0.0
    %857 = vmatpush1.msra.mxu0 0.0
    %858 = vmatprep.subr.mxu0 0.0
    %859 = vmatpush1.msra.mxu0 0.0
    %860 = vmatprep.subr.mxu0 0.0
    %861 = vmatpush1.msra.mxu0 0.0
    %862 = vmatprep.subr.mxu0 0.0
    %863 = vmatpush1.msra.mxu0 0.0
    %864 = vmatprep.subr.mxu0 0.0
    %865 = vmatpush1.msra.mxu0 0.0
    %866 = vmatprep.subr.mxu0 0.0
    %867 = vmatpush1.msra.mxu0 0.0
    %868 = vmatprep.subr.mxu0 0.0
    %869 = vmatpush1.msra.mxu0 0.0
    %870 = vmatprep.subr.mxu0 0.0
    %871 = vmatpush1.msra.mxu0 0.0
    %872 = vmatprep.subr.mxu0 0.0
    %873 = vmatpush1.msra.mxu0 0.0
    %874 = vmatprep.subr.mxu0 0.0
    %875 = vmatpush1.msra.mxu0 0.0
    %876 = vmatprep.subr.mxu0 0.0
    %877 = vmatpush1.msra.mxu0 0.0
    %878 = vmatprep.subr.mxu0 0.0
    %879 = vmatpush1.msra.mxu0 0.0
    %880 = vmatprep.subr.mxu0 0.0
    %881 = vmatpush1.msra.mxu0 0.0
    %882 = vmatprep.subr.mxu0 0.0
    %883 = vmatpush1.msra.mxu0 0.0
    %884 = vmatprep.subr.mxu0 0.0
    %885 = vmatpush1.msra.mxu0 0.0
    %886 = vmatprep.subr.mxu0 0.0
    %887 = vmatpush1.msra.mxu0 0.0
    %888 = vmatprep.subr.mxu0 0.0
    %889 = vmatpush1.msra.mxu0 0.0
    %890 = vmatprep.subr.mxu0 0.0
    %891 = vmatpush1.msra.mxu0 0.0
    %892 = vmatprep.subr.mxu0 0.0
    %893 = vmatpush1.msra.mxu0 0.0
    %894 = vmatprep.subr.mxu0 0.0
    %895 = vmatpush1.msra.mxu0 0.0
    %896 = vmatprep.subr.mxu0 0.0
    %897 = vmatpush1.msra.mxu0 0.0
    %898 = vmatprep.subr.mxu0 0.0
    %899 = vmatpush1.msra.mxu0 0.0
    %900 = vmatprep.mubr.f32.mxu0 0.0
    %901 = vmatmul.mubr.f32.gmra.mrb[0].mxu0 %v66
    %v902 = vpop.f32.mrb[0].mxu0
    %v903 = vadd.f32 0.0, %v902
    %v904 = vpop.f32.mrb[0].mxu0
    %905 = vmatprep.mubr.f32.mxu0 0.0
    %906 = vmatmul.mubr.f32.gmra.mrb[0].mxu0 %v69
    %v907 = vpop.f32.mrb[0].mxu0
    %v908 = vadd.f32 0.0, %v907
    %v909 = vpop.f32.mrb[0].mxu0
    %910 = vmatprep.mubr.f32.mxu0 0.0
    %911 = vmatmul.mubr.f32.gmra.mrb[0].mxu0 %v72
    %v912 = vpop.f32.mrb[0].mxu0
    %v913 = vadd.f32 0.0, %v912
    %v914 = vpop.f32.mrb[0].mxu0
    %915 = vmatprep.mubr.f32.mxu0 0.0
    %916 = vmatmul.mubr.f32.gmra.mrb[0].mxu0 %v75
    %v917 = vpop.f32.mrb[0].mxu0
    %v918 = vadd.f32 0.0, %v917
    %v919 = vpop.f32.mrb[0].mxu0
    %920 = vmatprep.mubr.f32.mxu0 0.0
    %921 = vmatmul.mubr.f32.gmra.mrb[0].mxu0 %v78
    %v922 = vpop.f32.mrb[0].mxu0
    %v923 = vadd.f32 0.0, %v922
    %v924 = vpop.f32.mrb[0].mxu0
    %925 = vmatprep.mubr.f32.mxu0 0.0
    %926 = vmatmul.mubr.f32.gmra.mrb[0].mxu0 %v81
    %v927 = vpop.f32.mrb[0].mxu0
    %v928 = vadd.f32 0.0, %v927
    %v929 = vpop.f32.mrb[0].mxu0
    %930 = vmatprep.mubr.f32.mxu0 0.0
    %931 = vmatmul.mubr.f32.gmra.mrb[0].mxu0 %v84
    %v932 = vpop.f32.mrb[0].mxu0
    %v933 = vadd.f32 0.0, %v932
    %v934 = vpop.f32.mrb[0].mxu0
    %935 = vmatprep.mubr.f32.mxu0 0.0
    %936 = vmatmul.mubr.f32.gmra.mrb[0].mxu0 %v87
    %v937 = vpop.f32.mrb[0].mxu0
    %v938 = vadd.f32 0.0, %v937
    %v939 = vpop.f32.mrb[0].mxu0
    %940 = vmatprep.mubr.f32.mxu0 0.0
    %941 = vmatmul.mubr.f32.gmra.mrb[0].mxu0 %v90
    %v942 = vpop.f32.mrb[0].mxu0
    %v943 = vadd.f32 0.0, %v942
    %v944 = vpop.f32.mrb[0].mxu0
    %945 = vmatprep.mubr.f32.mxu0 0.0
    %946 = vmatmul.mubr.f32.gmra.mrb[0].mxu0 %v93
    %v947 = vpop.f32.mrb[0].mxu0
    %v948 = vadd.f32 0.0, %v947
    %v949 = vpop.f32.mrb[0].mxu0
    %950 = vmatprep.mubr.f32.mxu0 0.0
    %951 = vmatmul.mubr.f32.gmra.mrb[0].mxu0 %v96
    %v952 = vpop.f32.mrb[0].mxu0
    %v953 = vadd.f32 0.0, %v952
    %v954 = vpop.f32.mrb[0].mxu0
    %955 = vmatprep.mubr.f32.mxu0 0.0
    %956 = vmatmul.mubr.f32.gmra.mrb[0].mxu0 %v99
    %v957 = vpop.f32.mrb[0].mxu0
    %v958 = vadd.f32 0.0, %v957
    %v959 = vpop.f32.mrb[0].mxu0
    %960 = vmatprep.mubr.f32.mxu0 0.0
    %961 = vmatmul.mubr.f32.gmra.mrb[0].mxu0 %v102
    %v962 = vpop.f32.mrb[0].mxu0
    %v963 = vadd.f32 0.0, %v962
    %v964 = vpop.f32.mrb[0].mxu0
    %965 = vmatprep.mubr.f32.mxu0 0.0
    %966 = vmatmul.mubr.f32.gmra.mrb[0].mxu0 %v105
    %v967 = vpop.f32.mrb[0].mxu0
    %v968 = vadd.f32 0.0, %v967
    %v969 = vpop.f32.mrb[0].mxu0
    %970 = vmatprep.mubr.f32.mxu0 0.0
    %971 = vmatmul.mubr.f32.gmra.mrb[0].mxu0 %v108
    %v972 = vpop.f32.mrb[0].mxu0
    %v973 = vadd.f32 0.0, %v972
    %v974 = vpop.f32.mrb[0].mxu0
    %975 = vmatprep.mubr.f32.mxu0 0.0
    %976 = vmatmul.mubr.f32.gmra.mrb[0].mxu0 %v111
    %v977 = vpop.f32.mrb[0].mxu0
    %v978 = vadd.f32 0.0, %v977
    %v979 = vpop.f32.mrb[0].mxu0
    %980 = vdwg.mxu0
    %s981 = scalar_lea.vmem [#allocation2], 512
    %982 = vst [vmem:[%s981] sm:$0xff] %v903
    %983 = vst [vmem:[%s981 + $0x8] sm:$0xff] %v908
    %984 = vst [vmem:[%s981 + $0x10] sm:$0xff] %v913
    %985 = vst [vmem:[%s981 + $0x18] sm:$0xff] %v918
    %986 = vst [vmem:[%s981 + $0x20] sm:$0xff] %v923
    %987 = vst [vmem:[%s981 + $0x28] sm:$0xff] %v928
    %988 = vst [vmem:[%s981 + $0x30] sm:$0xff] %v933
    %989 = vst [vmem:[%s981 + $0x38] sm:$0xff] %v938
    %990 = vst [vmem:[%s981 + $0x40] sm:$0xff] %v943
    %991 = vst [vmem:[%s981 + $0x48] sm:$0xff] %v948
    %992 = vst [vmem:[%s981 + $0x50] sm:$0xff] %v953
    %993 = vst [vmem:[%s981 + $0x58] sm:$0xff] %v958
    %994 = vst [vmem:[%s981 + $0x60] sm:$0xff] %v963
    %995 = vst [vmem:[%s981 + $0x68] sm:$0xff] %v968
    %996 = vst [vmem:[%s981 + $0x70] sm:$0xff] %v973
    %997 = vst [vmem:[%s981 + $0x78] sm:$0xff] %v978
    %v998 = vld [vmem:[%s2] sm:$0xf]
    %v999 = vld [vmem:[%s2 + $0x4] sm:$0xf]
    %v1000 = vld [vmem:[%s2 + $0x8] sm:$0xf]
    %v1001 = vld [vmem:[%s2 + $0xc] sm:$0xf]
    %v1002 = vld [vmem:[%s2 + $0x10] sm:$0xf]
    %v1003 = vld [vmem:[%s2 + $0x14] sm:$0xf]
    %v1004 = vld [vmem:[%s2 + $0x18] sm:$0xf]
    %v1005 = vld [vmem:[%s2 + $0x1c] sm:$0xf]
    %v1006 = vld [vmem:[%s2 + $0x20] sm:$0xf]
    %v1007 = vld [vmem:[%s2 + $0x24] sm:$0xf]
    %v1008 = vld [vmem:[%s2 + $0x28] sm:$0xf]
    %v1009 = vld [vmem:[%s2 + $0x2c] sm:$0xf]
    %v1010 = vld [vmem:[%s2 + $0x30] sm:$0xf]
    %v1011 = vld [vmem:[%s2 + $0x34] sm:$0xf]
    %v1012 = vld [vmem:[%s2 + $0x38] sm:$0xf]
    %v1013 = vld [vmem:[%s2 + $0x3c] sm:$0xf]
    %v1014 = vld [vmem:[#allocation2] sm:$0xff]
    %v1015 = vld [vmem:[#allocation2 + $0x8] sm:$0xff]
    %v1016 = vld [vmem:[#allocation2 + $0x10] sm:$0xff]
    %v1017 = vld [vmem:[#allocation2 + $0x18] sm:$0xff]
    %v1018 = vld [vmem:[#allocation2 + $0x20] sm:$0xff]
    %v1019 = vld [vmem:[#allocation2 + $0x28] sm:$0xff]
    %v1020 = vld [vmem:[#allocation2 + $0x30] sm:$0xff]
    %v1021 = vld [vmem:[#allocation2 + $0x38] sm:$0xff]
    %v1022 = vld [vmem:[#allocation2 + $0x40] sm:$0xff]
    %v1023 = vld [vmem:[#allocation2 + $0x48] sm:$0xff]
    %v1024 = vld [vmem:[#allocation2 + $0x50] sm:$0xff]
    %v1025 = vld [vmem:[#allocation2 + $0x58] sm:$0xff]
    %v1026 = vld [vmem:[#allocation2 + $0x60] sm:$0xff]
    %v1027 = vld [vmem:[#allocation2 + $0x68] sm:$0xff]
    %v1028 = vld [vmem:[#allocation2 + $0x70] sm:$0xff]
    %v1029 = vld [vmem:[#allocation2 + $0x78] sm:$0xff]
    %v1046 = vunpack.c.l.b16 %v998
    %v1047 = vunpack.c.l.b16 %v999
    %v1048 = vunpack.c.l.b16 %v1000
    %v1049 = vunpack.c.l.b16 %v1001
    %v1050 = vunpack.c.l.b16 %v1002
    %v1051 = vunpack.c.l.b16 %v1003
    %v1052 = vunpack.c.l.b16 %v1004
    %v1053 = vunpack.c.l.b16 %v1005
    %v1054 = vunpack.c.l.b16 %v1006
    %v1055 = vunpack.c.l.b16 %v1007
    %v1056 = vunpack.c.l.b16 %v1008
    %v1057 = vunpack.c.l.b16 %v1009
    %v1058 = vunpack.c.l.b16 %v1010
    %v1059 = vunpack.c.l.b16 %v1011
    %v1060 = vunpack.c.l.b16 %v1012
    %v1061 = vunpack.c.l.b16 %v1013
    %v1062 = vpack.c.b16 %v1047, %v1046
    %v1063 = vpack.c.b16 %v1049, %v1048
    %v1064 = vpack.c.b16 %v1051, %v1050
    %v1065 = vpack.c.b16 %v1053, %v1052
    %v1066 = vpack.c.b16 %v1055, %v1054
    %v1067 = vpack.c.b16 %v1057, %v1056
    %v1068 = vpack.c.b16 %v1059, %v1058
    %v1069 = vpack.c.b16 %v1061, %v1060
    %vm1070 = vcmask 261120
    %v1072 = vsel %vm1070, %v1062, 0
    %v1075 = vsel %vm1070, %v1063, 0
    %v1078 = vsel %vm1070, %v1064, 0
    %v1081 = vsel %vm1070, %v1065, 0
    %v1084 = vsel %vm1070, %v1066, 0
    %v1087 = vsel %vm1070, %v1067, 0
    %v1090 = vsel %vm1070, %v1068, 0
    %v1093 = vsel %vm1070, %v1069, 0
    %1095 = vmatprep.subr.bf16.mxu0 0
    %1096 = vmatpush1.bf16.msra.mxu0 0
    %1097 = vmatprep.subr.bf16.mxu0 0
    %1098 = vmatpush1.bf16.msra.mxu0 0
    %1099 = vmatprep.subr.bf16.mxu0 0
    %1100 = vmatpush1.bf16.msra.mxu0 0
    %1101 = vmatprep.subr.bf16.mxu0 0
    %1102 = vmatpush1.bf16.msra.mxu0 0
    %1103 = vmatprep.subr.bf16.mxu0 0
    %1104 = vmatpush1.bf16.msra.mxu0 0
    %1105 = vmatprep.subr.bf16.mxu0 0
    %1106 = vmatpush1.bf16.msra.mxu0 0
    %1107 = vmatprep.subr.bf16.mxu0 0
    %1108 = vmatpush1.bf16.msra.mxu0 0
    %1109 = vmatprep.subr.bf16.mxu0 0
    %1110 = vmatpush1.bf16.msra.mxu0 0
    %1111 = vmatprep.subr.bf16.mxu0 0
    %1112 = vmatpush1.bf16.msra.mxu0 0
    %1113 = vmatprep.subr.bf16.mxu0 0
    %1114 = vmatpush1.bf16.msra.mxu0 0
    %1115 = vmatprep.subr.bf16.mxu0 0
    %1116 = vmatpush1.bf16.msra.mxu0 0
    %1117 = vmatprep.subr.bf16.mxu0 0
    %1118 = vmatpush1.bf16.msra.mxu0 0
    %1119 = vmatprep.subr.bf16.mxu0 0
    %1120 = vmatpush1.bf16.msra.mxu0 0
    %1121 = vmatprep.subr.bf16.mxu0 0
    %1122 = vmatpush1.bf16.msra.mxu0 0
    %1123 = vmatprep.subr.bf16.mxu0 0
    %1124 = vmatpush1.bf16.msra.mxu0 0
    %1125 = vmatprep.subr.bf16.mxu0 0
    %1126 = vmatpush1.bf16.msra.mxu0 0
    %1127 = vmatprep.mubr.bf16.mxu0 0
    %1128 = vmatmul.mubr.bf16.gmra.mrb[0].mxu0 %v1072
    %v1129 = vpop.f32.mrb[0].mxu0
    %v1130 = vadd.f32 0.0, %v1129
    %v1131 = vpop.f32.mrb[0].mxu0
    %v1132 = vpop.f32.mrb[0].mxu0
    %v1133 = vadd.f32 0.0, %v1132
    %v1134 = vpop.f32.mrb[0].mxu0
    %1135 = vmatprep.mubr.bf16.mxu0 0
    %1136 = vmatmul.mubr.bf16.gmra.mrb[0].mxu0 %v1075
    %v1137 = vpop.f32.mrb[0].mxu0
    %v1138 = vadd.f32 0.0, %v1137
    %v1139 = vpop.f32.mrb[0].mxu0
    %v1140 = vpop.f32.mrb[0].mxu0
    %v1141 = vadd.f32 0.0, %v1140
    %v1142 = vpop.f32.mrb[0].mxu0
    %1143 = vmatprep.mubr.bf16.mxu0 0
    %1144 = vmatmul.mubr.bf16.gmra.mrb[0].mxu0 %v1078
    %v1145 = vpop.f32.mrb[0].mxu0
    %v1146 = vadd.f32 0.0, %v1145
    %v1147 = vpop.f32.mrb[0].mxu0
    %v1148 = vpop.f32.mrb[0].mxu0
    %v1149 = vadd.f32 0.0, %v1148
    %v1150 = vpop.f32.mrb[0].mxu0
    %1151 = vmatprep.mubr.bf16.mxu0 0
    %1152 = vmatmul.mubr.bf16.gmra.mrb[0].mxu0 %v1081
    %v1153 = vpop.f32.mrb[0].mxu0
    %v1154 = vadd.f32 0.0, %v1153
    %v1155 = vpop.f32.mrb[0].mxu0
    %v1156 = vpop.f32.mrb[0].mxu0
    %v1157 = vadd.f32 0.0, %v1156
    %v1158 = vpop.f32.mrb[0].mxu0
    %1159 = vmatprep.mubr.bf16.mxu0 0
    %1160 = vmatmul.mubr.bf16.gmra.mrb[0].mxu0 %v1084
    %v1161 = vpop.f32.mrb[0].mxu0
    %v1162 = vadd.f32 0.0, %v1161
    %v1163 = vpop.f32.mrb[0].mxu0
    %v1164 = vpop.f32.mrb[0].mxu0
    %v1165 = vadd.f32 0.0, %v1164
    %v1166 = vpop.f32.mrb[0].mxu0
    %1167 = vmatprep.mubr.bf16.mxu0 0
    %1168 = vmatmul.mubr.bf16.gmra.mrb[0].mxu0 %v1087
    %v1169 = vpop.f32.mrb[0].mxu0
    %v1170 = vadd.f32 0.0, %v1169
    %v1171 = vpop.f32.mrb[0].mxu0
    %v1172 = vpop.f32.mrb[0].mxu0
    %v1173 = vadd.f32 0.0, %v1172
    %v1174 = vpop.f32.mrb[0].mxu0
    %1175 = vmatprep.mubr.bf16.mxu0 0
    %1176 = vmatmul.mubr.bf16.gmra.mrb[0].mxu0 %v1090
    %v1177 = vpop.f32.mrb[0].mxu0
    %v1178 = vadd.f32 0.0, %v1177
    %v1179 = vpop.f32.mrb[0].mxu0
    %v1180 = vpop.f32.mrb[0].mxu0
    %v1181 = vadd.f32 0.0, %v1180
    %v1182 = vpop.f32.mrb[0].mxu0
    %1183 = vmatprep.mubr.bf16.mxu0 0
    %1184 = vmatmul.mubr.bf16.gmra.mrb[0].mxu0 %v1093
    %v1185 = vpop.f32.mrb[0].mxu0
    %v1186 = vadd.f32 0.0, %v1185
    %v1187 = vpop.f32.mrb[0].mxu0
    %v1188 = vpop.f32.mrb[0].mxu0
    %v1189 = vadd.f32 0.0, %v1188
    %v1190 = vpop.f32.mrb[0].mxu0
    %1191 = vdwg.mxu0
    %v1192 = vadd.f32 %v1014, %v1130
    %v1193 = vadd.f32 %v1015, %v1133
    %v1194 = vadd.f32 %v1016, %v1138
    %v1195 = vadd.f32 %v1017, %v1141
    %v1196 = vadd.f32 %v1018, %v1146
    %v1197 = vadd.f32 %v1019, %v1149
    %v1198 = vadd.f32 %v1020, %v1154
    %v1199 = vadd.f32 %v1021, %v1157
    %v1200 = vadd.f32 %v1022, %v1162
    %v1201 = vadd.f32 %v1023, %v1165
    %v1202 = vadd.f32 %v1024, %v1170
    %v1203 = vadd.f32 %v1025, %v1173
    %v1204 = vadd.f32 %v1026, %v1178
    %v1205 = vadd.f32 %v1027, %v1181
    %v1206 = vadd.f32 %v1028, %v1186
    %v1207 = vadd.f32 %v1029, %v1189
    %v1208 = vxor.u32 %v1192, 2147483648
    %v1209 = vxor.u32 %v1193, 2147483648
    %v1210 = vxor.u32 %v1194, 2147483648
    %v1211 = vxor.u32 %v1195, 2147483648
    %v1212 = vmul.f32 %v1208, 1.442695
    %v1213 = vpow.pop %v1212
    %v1214 = vmul.f32 %v1209, 1.442695
    %v1215 = vpow.pop %v1214
    %v1216 = vmul.f32 %v1210, 1.442695
    %v1217 = vpow.pop %v1216
    %v1218 = vmul.f32 %v1211, 1.442695
    %v1219 = vpow.pop %v1218
    %v1220 = vadd.f32 %v1213, 1.0
    %v1221 = vadd.f32 %v1215, 1.0
    %v1222 = vadd.f32 %v1217, 1.0
    %v1223 = vadd.f32 %v1219, 1.0
    %v1224 = vrcp.pop %v1220
    %v1225 = vmul.f32 1.0, %v1224
    %v1226 = vrcp.pop %v1221
    %v1227 = vmul.f32 1.0, %v1226
    %v1228 = vrcp.pop %v1222
    %v1229 = vmul.f32 1.0, %v1228
    %v1230 = vrcp.pop %v1223
    %v1231 = vmul.f32 1.0, %v1230
    %v1232 = vxor.u32 %v1196, 2147483648
    %v1233 = vxor.u32 %v1197, 2147483648
    %v1234 = vxor.u32 %v1198, 2147483648
    %v1235 = vxor.u32 %v1199, 2147483648
    %v1236 = vmul.f32 %v1232, 1.442695
    %v1237 = vpow.pop %v1236
    %v1238 = vmul.f32 %v1233, 1.442695
    %v1239 = vpow.pop %v1238
    %v1240 = vmul.f32 %v1234, 1.442695
    %v1241 = vpow.pop %v1240
    %v1242 = vmul.f32 %v1235, 1.442695
    %v1243 = vpow.pop %v1242
    %v1244 = vadd.f32 %v1237, 1.0
    %v1245 = vadd.f32 %v1239, 1.0
    %v1246 = vadd.f32 %v1241, 1.0
    %v1247 = vadd.f32 %v1243, 1.0
    %v1248 = vrcp.pop %v1244
    %v1249 = vmul.f32 1.0, %v1248
    %v1250 = vrcp.pop %v1245
    %v1251 = vmul.f32 1.0, %v1250
    %v1252 = vrcp.pop %v1246
    %v1253 = vmul.f32 1.0, %v1252
    %v1254 = vrcp.pop %v1247
    %v1255 = vmul.f32 1.0, %v1254
    %v1256 = vtanh.pop %v1200
    %v1257 = vtanh.pop %v1201
    %v1258 = vtanh.pop %v1202
    %v1259 = vtanh.pop %v1203
    %v1260 = vxor.u32 %v1204, 2147483648
    %v1261 = vxor.u32 %v1205, 2147483648
    %v1262 = vxor.u32 %v1206, 2147483648
    %v1263 = vxor.u32 %v1207, 2147483648
    %v1264 = vmul.f32 %v1260, 1.442695
    %v1265 = vpow.pop %v1264
    %v1266 = vmul.f32 %v1261, 1.442695
    %v1267 = vpow.pop %v1266
    %v1268 = vmul.f32 %v1262, 1.442695
    %v1269 = vpow.pop %v1268
    %v1270 = vmul.f32 %v1263, 1.442695
    %v1271 = vpow.pop %v1270
    %v1272 = vadd.f32 %v1265, 1.0
    %v1273 = vadd.f32 %v1267, 1.0
    %v1274 = vadd.f32 %v1269, 1.0
    %v1275 = vadd.f32 %v1271, 1.0
    %v1276 = vrcp.pop %v1272
    %v1277 = vmul.f32 1.0, %v1276
    %v1278 = vrcp.pop %v1273
    %v1279 = vmul.f32 1.0, %v1278
    %v1280 = vrcp.pop %v1274
    %v1281 = vmul.f32 1.0, %v1280
    %v1282 = vrcp.pop %v1275
    %v1283 = vmul.f32 1.0, %v1282
    %v1284 = vmul.f32 %v1249, 0.0
    %v1285 = vmul.f32 %v1251, 0.0
    %v1286 = vmul.f32 %v1253, 0.0
    %v1287 = vmul.f32 %v1255, 0.0
    %v1288 = vmul.f32 %v1225, %v1256
    %v1289 = vmul.f32 %v1227, %v1257
    %v1290 = vmul.f32 %v1229, %v1258
    %v1291 = vmul.f32 %v1231, %v1259
    %v1292 = vadd.f32 %v1284, %v1288
    %v1293 = vadd.f32 %v1285, %v1289
    %v1294 = vadd.f32 %v1286, %v1290
    %v1295 = vadd.f32 %v1287, %v1291
    %v1296 = vtanh.pop %v1292
    %v1297 = vtanh.pop %v1293
    %v1298 = vtanh.pop %v1294
    %v1299 = vtanh.pop %v1295
    %v1300 = vmul.f32 %v1277, %v1296
    %v1301 = vmul.f32 %v1279, %v1297
    %v1302 = vmul.f32 %v1281, %v1298
    %v1303 = vmul.f32 %v1283, %v1299
    %v1304 = vld [vmem:[%s438] sm:$0xff]
    %v1305 = vld [vmem:[%s438 + $0x8] sm:$0xff]
    %v1306 = vld [vmem:[%s438 + $0x10] sm:$0xff]
    %v1307 = vld [vmem:[%s438 + $0x18] sm:$0xff]
    %v1308 = vld [vmem:[%s438 + $0x20] sm:$0xff]
    %v1309 = vld [vmem:[%s438 + $0x28] sm:$0xff]
    %v1310 = vld [vmem:[%s438 + $0x30] sm:$0xff]
    %v1311 = vld [vmem:[%s438 + $0x38] sm:$0xff]
    %v1312 = vld [vmem:[%s438 + $0x40] sm:$0xff]
    %v1313 = vld [vmem:[%s438 + $0x48] sm:$0xff]
    %v1314 = vld [vmem:[%s438 + $0x50] sm:$0xff]
    %v1315 = vld [vmem:[%s438 + $0x58] sm:$0xff]
    %v1316 = vld [vmem:[%s438 + $0x60] sm:$0xff]
    %v1317 = vld [vmem:[%s438 + $0x68] sm:$0xff]
    %v1318 = vld [vmem:[%s438 + $0x70] sm:$0xff]
    %v1319 = vld [vmem:[%s438 + $0x78] sm:$0xff]
    %v1320 = vpack.c.bf16 %v1301, %v1300
    %v1321 = vpack.c.bf16 %v1303, %v1302
    %1322 = vmatprep.subr.bf16.mxu0 0
    %1323 = vmatpush1.bf16.msra.mxu0 %v1320
    %1324 = vmatprep.subr.bf16.mxu0 0
    %1325 = vmatpush1.bf16.msra.mxu0 %v1321
    %1326 = vmatprep.subr.bf16.mxu0 0
    %1327 = vmatpush1.bf16.msra.mxu0 0
    %1328 = vmatprep.subr.bf16.mxu0 0
    %1329 = vmatpush1.bf16.msra.mxu0 0
    %1330 = vmatprep.subr.bf16.mxu0 0
    %1331 = vmatpush1.bf16.msra.mxu0 0
    %1332 = vmatprep.subr.bf16.mxu0 0
    %1333 = vmatpush1.bf16.msra.mxu0 0
    %1334 = vmatprep.subr.bf16.mxu0 0
    %1335 = vmatpush1.bf16.msra.mxu0 0
    %1336 = vmatprep.subr.bf16.mxu0 0
    %1337 = vmatpush1.bf16.msra.mxu0 0
    %1338 = vmatprep.subr.bf16.mxu0 0
    %1339 = vmatpush1.bf16.msra.mxu0 0
    %1340 = vmatprep.subr.bf16.mxu0 0
    %1341 = vmatpush1.bf16.msra.mxu0 0
    %1342 = vmatprep.subr.bf16.mxu0 0
    %1343 = vmatpush1.bf16.msra.mxu0 0
    %1344 = vmatprep.subr.bf16.mxu0 0
    %1345 = vmatpush1.bf16.msra.mxu0 0
    %1346 = vmatprep.subr.bf16.mxu0 0
    %1347 = vmatpush1.bf16.msra.mxu0 0
    %1348 = vmatprep.subr.bf16.mxu0 0
    %1349 = vmatpush1.bf16.msra.mxu0 0
    %1350 = vmatprep.subr.bf16.mxu0 0
    %1351 = vmatpush1.bf16.msra.mxu0 0
    %1352 = vmatprep.subr.bf16.mxu0 0
    %1353 = vmatpush1.bf16.msra.mxu0 0
    %1354 = vmatprep.mubr.bf16.mxu0 0
    %1355 = vmatmul.mubr.bf16.gmra.mrb[0].mxu0 %v1072
    %v1356 = vpop.f32.mrb[0].mxu0
    %v1357 = vadd.f32 0.0, %v1356
    %v1358 = vpop.f32.mrb[0].mxu0
    %v1359 = vpop.f32.mrb[0].mxu0
    %v1360 = vadd.f32 0.0, %v1359
    %v1361 = vpop.f32.mrb[0].mxu0
    %1362 = vmatprep.mubr.bf16.mxu0 0
    %1363 = vmatmul.mubr.bf16.gmra.mrb[0].mxu0 %v1075
    %v1364 = vpop.f32.mrb[0].mxu0
    %v1365 = vadd.f32 0.0, %v1364
    %v1366 = vpop.f32.mrb[0].mxu0
    %v1367 = vpop.f32.mrb[0].mxu0
    %v1368 = vadd.f32 0.0, %v1367
    %v1369 = vpop.f32.mrb[0].mxu0
    %1370 = vmatprep.mubr.bf16.mxu0 0
    %1371 = vmatmul.mubr.bf16.gmra.mrb[0].mxu0 %v1078
    %v1372 = vpop.f32.mrb[0].mxu0
    %v1373 = vadd.f32 0.0, %v1372
    %v1374 = vpop.f32.mrb[0].mxu0
    %v1375 = vpop.f32.mrb[0].mxu0
    %v1376 = vadd.f32 0.0, %v1375
    %v1377 = vpop.f32.mrb[0].mxu0
    %1378 = vmatprep.mubr.bf16.mxu0 0
    %1379 = vmatmul.mubr.bf16.gmra.mrb[0].mxu0 %v1081
    %v1380 = vpop.f32.mrb[0].mxu0
    %v1381 = vadd.f32 0.0, %v1380
    %v1382 = vpop.f32.mrb[0].mxu0
    %v1383 = vpop.f32.mrb[0].mxu0
    %v1384 = vadd.f32 0.0, %v1383
    %v1385 = vpop.f32.mrb[0].mxu0
    %1386 = vmatprep.mubr.bf16.mxu0 0
    %1387 = vmatmul.mubr.bf16.gmra.mrb[0].mxu0 %v1084
    %v1388 = vpop.f32.mrb[0].mxu0
    %v1389 = vadd.f32 0.0, %v1388
    %v1390 = vpop.f32.mrb[0].mxu0
    %v1391 = vpop.f32.mrb[0].mxu0
    %v1392 = vadd.f32 0.0, %v1391
    %v1393 = vpop.f32.mrb[0].mxu0
    %1394 = vmatprep.mubr.bf16.mxu0 0
    %1395 = vmatmul.mubr.bf16.gmra.mrb[0].mxu0 %v1087
    %v1396 = vpop.f32.mrb[0].mxu0
    %v1397 = vadd.f32 0.0, %v1396
    %v1398 = vpop.f32.mrb[0].mxu0
    %v1399 = vpop.f32.mrb[0].mxu0
    %v1400 = vadd.f32 0.0, %v1399
    %v1401 = vpop.f32.mrb[0].mxu0
    %1402 = vmatprep.mubr.bf16.mxu0 0
    %1403 = vmatmul.mubr.bf16.gmra.mrb[0].mxu0 %v1090
    %v1404 = vpop.f32.mrb[0].mxu0
    %v1405 = vadd.f32 0.0, %v1404
    %v1406 = vpop.f32.mrb[0].mxu0
    %v1407 = vpop.f32.mrb[0].mxu0
    %v1408 = vadd.f32 0.0, %v1407
    %v1409 = vpop.f32.mrb[0].mxu0
    %1410 = vmatprep.mubr.bf16.mxu0 0
    %1411 = vmatmul.mubr.bf16.gmra.mrb[0].mxu0 %v1093
    %v1412 = vpop.f32.mrb[0].mxu0
    %v1413 = vadd.f32 0.0, %v1412
    %v1414 = vpop.f32.mrb[0].mxu0
    %v1415 = vpop.f32.mrb[0].mxu0
    %v1416 = vadd.f32 0.0, %v1415
    %v1417 = vpop.f32.mrb[0].mxu0
    %1418 = vdwg.mxu0
    %v1419 = vadd.f32 %v1304, %v1357
    %v1420 = vadd.f32 %v1305, %v1360
    %v1421 = vadd.f32 %v1306, %v1365
    %v1422 = vadd.f32 %v1307, %v1368
    %v1423 = vadd.f32 %v1308, %v1373
    %v1424 = vadd.f32 %v1309, %v1376
    %v1425 = vadd.f32 %v1310, %v1381
    %v1426 = vadd.f32 %v1311, %v1384
    %v1427 = vadd.f32 %v1312, %v1389
    %v1428 = vadd.f32 %v1313, %v1392
    %v1429 = vadd.f32 %v1314, %v1397
    %v1430 = vadd.f32 %v1315, %v1400
    %v1431 = vadd.f32 %v1316, %v1405
    %v1432 = vadd.f32 %v1317, %v1408
    %v1433 = vadd.f32 %v1318, %v1413
    %v1434 = vadd.f32 %v1319, %v1416
    %v1435 = vxor.u32 %v1419, 2147483648
    %v1436 = vxor.u32 %v1420, 2147483648
    %v1437 = vxor.u32 %v1421, 2147483648
    %v1438 = vxor.u32 %v1422, 2147483648
    %v1439 = vmul.f32 %v1435, 1.442695
    %v1440 = vpow.pop %v1439
    %v1441 = vmul.f32 %v1436, 1.442695
    %v1442 = vpow.pop %v1441
    %v1443 = vmul.f32 %v1437, 1.442695
    %v1444 = vpow.pop %v1443
    %v1445 = vmul.f32 %v1438, 1.442695
    %v1446 = vpow.pop %v1445
    %v1447 = vadd.f32 %v1440, 1.0
    %v1448 = vadd.f32 %v1442, 1.0
    %v1449 = vadd.f32 %v1444, 1.0
    %v1450 = vadd.f32 %v1446, 1.0
    %v1451 = vrcp.pop %v1447
    %v1452 = vmul.f32 1.0, %v1451
    %v1453 = vrcp.pop %v1448
    %v1454 = vmul.f32 1.0, %v1453
    %v1455 = vrcp.pop %v1449
    %v1456 = vmul.f32 1.0, %v1455
    %v1457 = vrcp.pop %v1450
    %v1458 = vmul.f32 1.0, %v1457
    %v1459 = vxor.u32 %v1423, 2147483648
    %v1460 = vxor.u32 %v1424, 2147483648
    %v1461 = vxor.u32 %v1425, 2147483648
    %v1462 = vxor.u32 %v1426, 2147483648
    %v1463 = vmul.f32 %v1459, 1.442695
    %v1464 = vpow.pop %v1463
    %v1465 = vmul.f32 %v1460, 1.442695
    %v1466 = vpow.pop %v1465
    %v1467 = vmul.f32 %v1461, 1.442695
    %v1468 = vpow.pop %v1467
    %v1469 = vmul.f32 %v1462, 1.442695
    %v1470 = vpow.pop %v1469
    %v1471 = vadd.f32 %v1464, 1.0
    %v1472 = vadd.f32 %v1466, 1.0
    %v1473 = vadd.f32 %v1468, 1.0
    %v1474 = vadd.f32 %v1470, 1.0
    %v1475 = vrcp.pop %v1471
    %v1476 = vmul.f32 1.0, %v1475
    %v1477 = vrcp.pop %v1472
    %v1478 = vmul.f32 1.0, %v1477
    %v1479 = vrcp.pop %v1473
    %v1480 = vmul.f32 1.0, %v1479
    %v1481 = vrcp.pop %v1474
    %v1482 = vmul.f32 1.0, %v1481
    %v1483 = vtanh.pop %v1427
    %v1484 = vtanh.pop %v1428
    %v1485 = vtanh.pop %v1429
    %v1486 = vtanh.pop %v1430
    %v1487 = vxor.u32 %v1431, 2147483648
    %v1488 = vxor.u32 %v1432, 2147483648
    %v1489 = vxor.u32 %v1433, 2147483648
    %v1490 = vxor.u32 %v1434, 2147483648
    %v1491 = vmul.f32 %v1487, 1.442695
    %v1492 = vpow.pop %v1491
    %v1493 = vmul.f32 %v1488, 1.442695
    %v1494 = vpow.pop %v1493
    %v1495 = vmul.f32 %v1489, 1.442695
    %v1496 = vpow.pop %v1495
    %v1497 = vmul.f32 %v1490, 1.442695
    %v1498 = vpow.pop %v1497
    %v1499 = vadd.f32 %v1492, 1.0
    %v1500 = vadd.f32 %v1494, 1.0
    %v1501 = vadd.f32 %v1496, 1.0
    %v1502 = vadd.f32 %v1498, 1.0
    %v1503 = vrcp.pop %v1499
    %v1504 = vmul.f32 1.0, %v1503
    %v1505 = vrcp.pop %v1500
    %v1506 = vmul.f32 1.0, %v1505
    %v1507 = vrcp.pop %v1501
    %v1508 = vmul.f32 1.0, %v1507
    %v1509 = vrcp.pop %v1502
    %v1510 = vmul.f32 1.0, %v1509
    %v1511 = vmul.f32 %v1476, %v1292
    %v1512 = vmul.f32 %v1478, %v1293
    %v1513 = vmul.f32 %v1480, %v1294
    %v1514 = vmul.f32 %v1482, %v1295
    %v1515 = vmul.f32 %v1452, %v1483
    %v1516 = vmul.f32 %v1454, %v1484
    %v1517 = vmul.f32 %v1456, %v1485
    %v1518 = vmul.f32 %v1458, %v1486
    %v1519 = vadd.f32 %v1511, %v1515
    %v1520 = vadd.f32 %v1512, %v1516
    %v1521 = vadd.f32 %v1513, %v1517
    %v1522 = vadd.f32 %v1514, %v1518
    %v1523 = vtanh.pop %v1519
    %v1524 = vtanh.pop %v1520
    %v1525 = vtanh.pop %v1521
    %v1526 = vtanh.pop %v1522
    %v1527 = vmul.f32 %v1504, %v1523
    %v1528 = vmul.f32 %v1506, %v1524
    %v1529 = vmul.f32 %v1508, %v1525
    %v1530 = vmul.f32 %v1510, %v1526
    %v1531 = vld [vmem:[%s619] sm:$0xff]
    %v1532 = vld [vmem:[%s619 + $0x8] sm:$0xff]
    %v1533 = vld [vmem:[%s619 + $0x10] sm:$0xff]
    %v1534 = vld [vmem:[%s619 + $0x18] sm:$0xff]
    %v1535 = vld [vmem:[%s619 + $0x20] sm:$0xff]
    %v1536 = vld [vmem:[%s619 + $0x28] sm:$0xff]
    %v1537 = vld [vmem:[%s619 + $0x30] sm:$0xff]
    %v1538 = vld [vmem:[%s619 + $0x38] sm:$0xff]
    %v1539 = vld [vmem:[%s619 + $0x40] sm:$0xff]
    %v1540 = vld [vmem:[%s619 + $0x48] sm:$0xff]
    %v1541 = vld [vmem:[%s619 + $0x50] sm:$0xff]
    %v1542 = vld [vmem:[%s619 + $0x58] sm:$0xff]
    %v1543 = vld [vmem:[%s619 + $0x60] sm:$0xff]
    %v1544 = vld [vmem:[%s619 + $0x68] sm:$0xff]
    %v1545 = vld [vmem:[%s619 + $0x70] sm:$0xff]
    %v1546 = vld [vmem:[%s619 + $0x78] sm:$0xff]
    %v1547 = vpack.c.bf16 %v1528, %v1527
    %v1548 = vpack.c.bf16 %v1530, %v1529
    %1549 = vmatprep.subr.bf16.mxu0 0
    %1550 = vmatpush1.bf16.msra.mxu0 %v1547
    %1551 = vmatprep.subr.bf16.mxu0 0
    %1552 = vmatpush1.bf16.msra.mxu0 %v1548
    %1553 = vmatprep.subr.bf16.mxu0 0
    %1554 = vmatpush1.bf16.msra.mxu0 0
    %1555 = vmatprep.subr.bf16.mxu0 0
    %1556 = vmatpush1.bf16.msra.mxu0 0
    %1557 = vmatprep.subr.bf16.mxu0 0
    %1558 = vmatpush1.bf16.msra.mxu0 0
    %1559 = vmatprep.subr.bf16.mxu0 0
    %1560 = vmatpush1.bf16.msra.mxu0 0
    %1561 = vmatprep.subr.bf16.mxu0 0
    %1562 = vmatpush1.bf16.msra.mxu0 0
    %1563 = vmatprep.subr.bf16.mxu0 0
    %1564 = vmatpush1.bf16.msra.mxu0 0
    %1565 = vmatprep.subr.bf16.mxu0 0
    %1566 = vmatpush1.bf16.msra.mxu0 0
    %1567 = vmatprep.subr.bf16.mxu0 0
    %1568 = vmatpush1.bf16.msra.mxu0 0
    %1569 = vmatprep.subr.bf16.mxu0 0
    %1570 = vmatpush1.bf16.msra.mxu0 0
    %1571 = vmatprep.subr.bf16.mxu0 0
    %1572 = vmatpush1.bf16.msra.mxu0 0
    %1573 = vmatprep.subr.bf16.mxu0 0
    %1574 = vmatpush1.bf16.msra.mxu0 0
    %1575 = vmatprep.subr.bf16.mxu0 0
    %1576 = vmatpush1.bf16.msra.mxu0 0
    %1577 = vmatprep.subr.bf16.mxu0 0
    %1578 = vmatpush1.bf16.msra.mxu0 0
    %1579 = vmatprep.subr.bf16.mxu0 0
    %1580 = vmatpush1.bf16.msra.mxu0 0
    %1581 = vmatprep.mubr.bf16.mxu0 0
    %1582 = vmatmul.mubr.bf16.gmra.mrb[0].mxu0 %v1072
    %v1583 = vpop.f32.mrb[0].mxu0
    %v1584 = vadd.f32 0.0, %v1583
    %v1585 = vpop.f32.mrb[0].mxu0
    %v1586 = vpop.f32.mrb[0].mxu0
    %v1587 = vadd.f32 0.0, %v1586
    %v1588 = vpop.f32.mrb[0].mxu0
    %1589 = vmatprep.mubr.bf16.mxu0 0
    %1590 = vmatmul.mubr.bf16.gmra.mrb[0].mxu0 %v1075
    %v1591 = vpop.f32.mrb[0].mxu0
    %v1592 = vadd.f32 0.0, %v1591
    %v1593 = vpop.f32.mrb[0].mxu0
    %v1594 = vpop.f32.mrb[0].mxu0
    %v1595 = vadd.f32 0.0, %v1594
    %v1596 = vpop.f32.mrb[0].mxu0
    %1597 = vmatprep.mubr.bf16.mxu0 0
    %1598 = vmatmul.mubr.bf16.gmra.mrb[0].mxu0 %v1078
    %v1599 = vpop.f32.mrb[0].mxu0
    %v1600 = vadd.f32 0.0, %v1599
    %v1601 = vpop.f32.mrb[0].mxu0
    %v1602 = vpop.f32.mrb[0].mxu0
    %v1603 = vadd.f32 0.0, %v1602
    %v1604 = vpop.f32.mrb[0].mxu0
    %1605 = vmatprep.mubr.bf16.mxu0 0
    %1606 = vmatmul.mubr.bf16.gmra.mrb[0].mxu0 %v1081
    %v1607 = vpop.f32.mrb[0].mxu0
    %v1608 = vadd.f32 0.0, %v1607
    %v1609 = vpop.f32.mrb[0].mxu0
    %v1610 = vpop.f32.mrb[0].mxu0
    %v1611 = vadd.f32 0.0, %v1610
    %v1612 = vpop.f32.mrb[0].mxu0
    %1613 = vmatprep.mubr.bf16.mxu0 0
    %1614 = vmatmul.mubr.bf16.gmra.mrb[0].mxu0 %v1084
    %v1615 = vpop.f32.mrb[0].mxu0
    %v1616 = vadd.f32 0.0, %v1615
    %v1617 = vpop.f32.mrb[0].mxu0
    %v1618 = vpop.f32.mrb[0].mxu0
    %v1619 = vadd.f32 0.0, %v1618
    %v1620 = vpop.f32.mrb[0].mxu0
    %1621 = vmatprep.mubr.bf16.mxu0 0
    %1622 = vmatmul.mubr.bf16.gmra.mrb[0].mxu0 %v1087
    %v1623 = vpop.f32.mrb[0].mxu0
    %v1624 = vadd.f32 0.0, %v1623
    %v1625 = vpop.f32.mrb[0].mxu0
    %v1626 = vpop.f32.mrb[0].mxu0
    %v1627 = vadd.f32 0.0, %v1626
    %v1628 = vpop.f32.mrb[0].mxu0
    %1629 = vmatprep.mubr.bf16.mxu0 0
    %1630 = vmatmul.mubr.bf16.gmra.mrb[0].mxu0 %v1090
    %v1631 = vpop.f32.mrb[0].mxu0
    %v1632 = vadd.f32 0.0, %v1631
    %v1633 = vpop.f32.mrb[0].mxu0
    %v1634 = vpop.f32.mrb[0].mxu0
    %v1635 = vadd.f32 0.0, %v1634
    %v1636 = vpop.f32.mrb[0].mxu0
    %1637 = vmatprep.mubr.bf16.mxu0 0
    %1638 = vmatmul.mubr.bf16.gmra.mrb[0].mxu0 %v1093
    %v1639 = vpop.f32.mrb[0].mxu0
    %v1640 = vadd.f32 0.0, %v1639
    %v1641 = vpop.f32.mrb[0].mxu0
    %v1642 = vpop.f32.mrb[0].mxu0
    %v1643 = vadd.f32 0.0, %v1642
    %v1644 = vpop.f32.mrb[0].mxu0
    %1645 = vdwg.mxu0
    %v1646 = vadd.f32 %v1531, %v1584
    %v1647 = vadd.f32 %v1532, %v1587
    %v1648 = vadd.f32 %v1533, %v1592
    %v1649 = vadd.f32 %v1534, %v1595
    %v1650 = vadd.f32 %v1535, %v1600
    %v1651 = vadd.f32 %v1536, %v1603
    %v1652 = vadd.f32 %v1537, %v1608
    %v1653 = vadd.f32 %v1538, %v1611
    %v1654 = vadd.f32 %v1539, %v1616
    %v1655 = vadd.f32 %v1540, %v1619
    %v1656 = vadd.f32 %v1541, %v1624
    %v1657 = vadd.f32 %v1542, %v1627
    %v1658 = vadd.f32 %v1543, %v1632
    %v1659 = vadd.f32 %v1544, %v1635
    %v1660 = vadd.f32 %v1545, %v1640
    %v1661 = vadd.f32 %v1546, %v1643
    %v1662 = vxor.u32 %v1646, 2147483648
    %v1663 = vxor.u32 %v1647, 2147483648
    %v1664 = vxor.u32 %v1648, 2147483648
    %v1665 = vxor.u32 %v1649, 2147483648
    %v1666 = vmul.f32 %v1662, 1.442695
    %v1667 = vpow.pop %v1666
    %v1668 = vmul.f32 %v1663, 1.442695
    %v1669 = vpow.pop %v1668
    %v1670 = vmul.f32 %v1664, 1.442695
    %v1671 = vpow.pop %v1670
    %v1672 = vmul.f32 %v1665, 1.442695
    %v1673 = vpow.pop %v1672
    %v1674 = vadd.f32 %v1667, 1.0
    %v1675 = vadd.f32 %v1669, 1.0
    %v1676 = vadd.f32 %v1671, 1.0
    %v1677 = vadd.f32 %v1673, 1.0
    %v1678 = vrcp.pop %v1674
    %v1679 = vmul.f32 1.0, %v1678
    %v1680 = vrcp.pop %v1675
    %v1681 = vmul.f32 1.0, %v1680
    %v1682 = vrcp.pop %v1676
    %v1683 = vmul.f32 1.0, %v1682
    %v1684 = vrcp.pop %v1677
    %v1685 = vmul.f32 1.0, %v1684
    %v1686 = vxor.u32 %v1650, 2147483648
    %v1687 = vxor.u32 %v1651, 2147483648
    %v1688 = vxor.u32 %v1652, 2147483648
    %v1689 = vxor.u32 %v1653, 2147483648
    %v1690 = vmul.f32 %v1686, 1.442695
    %v1691 = vpow.pop %v1690
    %v1692 = vmul.f32 %v1687, 1.442695
    %v1693 = vpow.pop %v1692
    %v1694 = vmul.f32 %v1688, 1.442695
    %v1695 = vpow.pop %v1694
    %v1696 = vmul.f32 %v1689, 1.442695
    %v1697 = vpow.pop %v1696
    %v1698 = vadd.f32 %v1691, 1.0
    %v1699 = vadd.f32 %v1693, 1.0
    %v1700 = vadd.f32 %v1695, 1.0
    %v1701 = vadd.f32 %v1697, 1.0
    %v1702 = vrcp.pop %v1698
    %v1703 = vmul.f32 1.0, %v1702
    %v1704 = vrcp.pop %v1699
    %v1705 = vmul.f32 1.0, %v1704
    %v1706 = vrcp.pop %v1700
    %v1707 = vmul.f32 1.0, %v1706
    %v1708 = vrcp.pop %v1701
    %v1709 = vmul.f32 1.0, %v1708
    %v1710 = vtanh.pop %v1654
    %v1711 = vtanh.pop %v1655
    %v1712 = vtanh.pop %v1656
    %v1713 = vtanh.pop %v1657
    %v1714 = vxor.u32 %v1658, 2147483648
    %v1715 = vxor.u32 %v1659, 2147483648
    %v1716 = vxor.u32 %v1660, 2147483648
    %v1717 = vxor.u32 %v1661, 2147483648
    %v1718 = vmul.f32 %v1714, 1.442695
    %v1719 = vpow.pop %v1718
    %v1720 = vmul.f32 %v1715, 1.442695
    %v1721 = vpow.pop %v1720
    %v1722 = vmul.f32 %v1716, 1.442695
    %v1723 = vpow.pop %v1722
    %v1724 = vmul.f32 %v1717, 1.442695
    %v1725 = vpow.pop %v1724
    %v1726 = vadd.f32 %v1719, 1.0
    %v1727 = vadd.f32 %v1721, 1.0
    %v1728 = vadd.f32 %v1723, 1.0
    %v1729 = vadd.f32 %v1725, 1.0
    %v1730 = vrcp.pop %v1726
    %v1731 = vmul.f32 1.0, %v1730
    %v1732 = vrcp.pop %v1727
    %v1733 = vmul.f32 1.0, %v1732
    %v1734 = vrcp.pop %v1728
    %v1735 = vmul.f32 1.0, %v1734
    %v1736 = vrcp.pop %v1729
    %v1737 = vmul.f32 1.0, %v1736
    %v1738 = vmul.f32 %v1703, %v1519
    %v1739 = vmul.f32 %v1705, %v1520
    %v1740 = vmul.f32 %v1707, %v1521
    %v1741 = vmul.f32 %v1709, %v1522
    %v1742 = vmul.f32 %v1679, %v1710
    %v1743 = vmul.f32 %v1681, %v1711
    %v1744 = vmul.f32 %v1683, %v1712
    %v1745 = vmul.f32 %v1685, %v1713
    %v1746 = vadd.f32 %v1738, %v1742
    %v1747 = vadd.f32 %v1739, %v1743
    %v1748 = vadd.f32 %v1740, %v1744
    %v1749 = vadd.f32 %v1741, %v1745
    %v1750 = vtanh.pop %v1746
    %v1751 = vtanh.pop %v1747
    %v1752 = vtanh.pop %v1748
    %v1753 = vtanh.pop %v1749
    %v1754 = vmul.f32 %v1731, %v1750
    %v1755 = vmul.f32 %v1733, %v1751
    %v1756 = vmul.f32 %v1735, %v1752
    %v1757 = vmul.f32 %v1737, %v1753
    %v1758 = vld [vmem:[%s800] sm:$0xff]
    %v1759 = vld [vmem:[%s800 + $0x8] sm:$0xff]
    %v1760 = vld [vmem:[%s800 + $0x10] sm:$0xff]
    %v1761 = vld [vmem:[%s800 + $0x18] sm:$0xff]
    %v1762 = vld [vmem:[%s800 + $0x20] sm:$0xff]
    %v1763 = vld [vmem:[%s800 + $0x28] sm:$0xff]
    %v1764 = vld [vmem:[%s800 + $0x30] sm:$0xff]
    %v1765 = vld [vmem:[%s800 + $0x38] sm:$0xff]
    %v1766 = vld [vmem:[%s800 + $0x40] sm:$0xff]
    %v1767 = vld [vmem:[%s800 + $0x48] sm:$0xff]
    %v1768 = vld [vmem:[%s800 + $0x50] sm:$0xff]
    %v1769 = vld [vmem:[%s800 + $0x58] sm:$0xff]
    %v1770 = vld [vmem:[%s800 + $0x60] sm:$0xff]
    %v1771 = vld [vmem:[%s800 + $0x68] sm:$0xff]
    %v1772 = vld [vmem:[%s800 + $0x70] sm:$0xff]
    %v1773 = vld [vmem:[%s800 + $0x78] sm:$0xff]
    %v1774 = vpack.c.bf16 %v1755, %v1754
    %v1775 = vpack.c.bf16 %v1757, %v1756
    %1776 = vmatprep.subr.bf16.mxu0 0
    %1777 = vmatpush1.bf16.msra.mxu0 %v1774
    %1778 = vmatprep.subr.bf16.mxu0 0
    %1779 = vmatpush1.bf16.msra.mxu0 %v1775
    %1780 = vmatprep.subr.bf16.mxu0 0
    %1781 = vmatpush1.bf16.msra.mxu0 0
    %1782 = vmatprep.subr.bf16.mxu0 0
    %1783 = vmatpush1.bf16.msra.mxu0 0
    %1784 = vmatprep.subr.bf16.mxu0 0
    %1785 = vmatpush1.bf16.msra.mxu0 0
    %1786 = vmatprep.subr.bf16.mxu0 0
    %1787 = vmatpush1.bf16.msra.mxu0 0
    %1788 = vmatprep.subr.bf16.mxu0 0
    %1789 = vmatpush1.bf16.msra.mxu0 0
    %1790 = vmatprep.subr.bf16.mxu0 0
    %1791 = vmatpush1.bf16.msra.mxu0 0
    %1792 = vmatprep.subr.bf16.mxu0 0
    %1793 = vmatpush1.bf16.msra.mxu0 0
    %1794 = vmatprep.subr.bf16.mxu0 0
    %1795 = vmatpush1.bf16.msra.mxu0 0
    %1796 = vmatprep.subr.bf16.mxu0 0
    %1797 = vmatpush1.bf16.msra.mxu0 0
    %1798 = vmatprep.subr.bf16.mxu0 0
    %1799 = vmatpush1.bf16.msra.mxu0 0
    %1800 = vmatprep.subr.bf16.mxu0 0
    %1801 = vmatpush1.bf16.msra.mxu0 0
    %1802 = vmatprep.subr.bf16.mxu0 0
    %1803 = vmatpush1.bf16.msra.mxu0 0
    %1804 = vmatprep.subr.bf16.mxu0 0
    %1805 = vmatpush1.bf16.msra.mxu0 0
    %1806 = vmatprep.subr.bf16.mxu0 0
    %1807 = vmatpush1.bf16.msra.mxu0 0
    %1808 = vmatprep.mubr.bf16.mxu0 0
    %1809 = vmatmul.mubr.bf16.gmra.mrb[0].mxu0 %v1072
    %v1810 = vpop.f32.mrb[0].mxu0
    %v1811 = vadd.f32 0.0, %v1810
    %v1812 = vpop.f32.mrb[0].mxu0
    %v1813 = vpop.f32.mrb[0].mxu0
    %v1814 = vadd.f32 0.0, %v1813
    %v1815 = vpop.f32.mrb[0].mxu0
    %1816 = vmatprep.mubr.bf16.mxu0 0
    %1817 = vmatmul.mubr.bf16.gmra.mrb[0].mxu0 %v1075
    %v1818 = vpop.f32.mrb[0].mxu0
    %v1819 = vadd.f32 0.0, %v1818
    %v1820 = vpop.f32.mrb[0].mxu0
    %v1821 = vpop.f32.mrb[0].mxu0
    %v1822 = vadd.f32 0.0, %v1821
    %v1823 = vpop.f32.mrb[0].mxu0
    %1824 = vmatprep.mubr.bf16.mxu0 0
    %1825 = vmatmul.mubr.bf16.gmra.mrb[0].mxu0 %v1078
    %v1826 = vpop.f32.mrb[0].mxu0
    %v1827 = vadd.f32 0.0, %v1826
    %v1828 = vpop.f32.mrb[0].mxu0
    %v1829 = vpop.f32.mrb[0].mxu0
    %v1830 = vadd.f32 0.0, %v1829
    %v1831 = vpop.f32.mrb[0].mxu0
    %1832 = vmatprep.mubr.bf16.mxu0 0
    %1833 = vmatmul.mubr.bf16.gmra.mrb[0].mxu0 %v1081
    %v1834 = vpop.f32.mrb[0].mxu0
    %v1835 = vadd.f32 0.0, %v1834
    %v1836 = vpop.f32.mrb[0].mxu0
    %v1837 = vpop.f32.mrb[0].mxu0
    %v1838 = vadd.f32 0.0, %v1837
    %v1839 = vpop.f32.mrb[0].mxu0
    %1840 = vmatprep.mubr.bf16.mxu0 0
    %1841 = vmatmul.mubr.bf16.gmra.mrb[0].mxu0 %v1084
    %v1842 = vpop.f32.mrb[0].mxu0
    %v1843 = vadd.f32 0.0, %v1842
    %v1844 = vpop.f32.mrb[0].mxu0
    %v1845 = vpop.f32.mrb[0].mxu0
    %v1846 = vadd.f32 0.0, %v1845
    %v1847 = vpop.f32.mrb[0].mxu0
    %1848 = vmatprep.mubr.bf16.mxu0 0
    %1849 = vmatmul.mubr.bf16.gmra.mrb[0].mxu0 %v1087
    %v1850 = vpop.f32.mrb[0].mxu0
    %v1851 = vadd.f32 0.0, %v1850
    %v1852 = vpop.f32.mrb[0].mxu0
    %v1853 = vpop.f32.mrb[0].mxu0
    %v1854 = vadd.f32 0.0, %v1853
    %v1855 = vpop.f32.mrb[0].mxu0
    %1856 = vmatprep.mubr.bf16.mxu0 0
    %1857 = vmatmul.mubr.bf16.gmra.mrb[0].mxu0 %v1090
    %v1858 = vpop.f32.mrb[0].mxu0
    %v1859 = vadd.f32 0.0, %v1858
    %v1860 = vpop.f32.mrb[0].mxu0
    %v1861 = vpop.f32.mrb[0].mxu0
    %v1862 = vadd.f32 0.0, %v1861
    %v1863 = vpop.f32.mrb[0].mxu0
    %1864 = vmatprep.mubr.bf16.mxu0 0
    %1865 = vmatmul.mubr.bf16.gmra.mrb[0].mxu0 %v1093
    %v1866 = vpop.f32.mrb[0].mxu0
    %v1867 = vadd.f32 0.0, %v1866
    %v1868 = vpop.f32.mrb[0].mxu0
    %v1869 = vpop.f32.mrb[0].mxu0
    %v1870 = vadd.f32 0.0, %v1869
    %v1871 = vpop.f32.mrb[0].mxu0
    %1872 = vdwg.mxu0
    %v1873 = vadd.f32 %v1758, %v1811
    %v1874 = vadd.f32 %v1759, %v1814
    %v1875 = vadd.f32 %v1760, %v1819
    %v1876 = vadd.f32 %v1761, %v1822
    %v1877 = vadd.f32 %v1762, %v1827
    %v1878 = vadd.f32 %v1763, %v1830
    %v1879 = vadd.f32 %v1764, %v1835
    %v1880 = vadd.f32 %v1765, %v1838
    %v1881 = vadd.f32 %v1766, %v1843
    %v1882 = vadd.f32 %v1767, %v1846
    %v1883 = vadd.f32 %v1768, %v1851
    %v1884 = vadd.f32 %v1769, %v1854
    %v1885 = vadd.f32 %v1770, %v1859
    %v1886 = vadd.f32 %v1771, %v1862
    %v1887 = vadd.f32 %v1772, %v1867
    %v1888 = vadd.f32 %v1773, %v1870
    %v1889 = vxor.u32 %v1873, 2147483648
    %v1890 = vxor.u32 %v1874, 2147483648
    %v1891 = vxor.u32 %v1875, 2147483648
    %v1892 = vxor.u32 %v1876, 2147483648
    %v1893 = vmul.f32 %v1889, 1.442695
    %v1894 = vpow.pop %v1893
    %v1895 = vmul.f32 %v1890, 1.442695
    %v1896 = vpow.pop %v1895
    %v1897 = vmul.f32 %v1891, 1.442695
    %v1898 = vpow.pop %v1897
    %v1899 = vmul.f32 %v1892, 1.442695
    %v1900 = vpow.pop %v1899
    %v1901 = vadd.f32 %v1894, 1.0
    %v1902 = vadd.f32 %v1896, 1.0
    %v1903 = vadd.f32 %v1898, 1.0
    %v1904 = vadd.f32 %v1900, 1.0
    %v1905 = vrcp.pop %v1901
    %v1906 = vmul.f32 1.0, %v1905
    %v1907 = vrcp.pop %v1902
    %v1908 = vmul.f32 1.0, %v1907
    %v1909 = vrcp.pop %v1903
    %v1910 = vmul.f32 1.0, %v1909
    %v1911 = vrcp.pop %v1904
    %v1912 = vmul.f32 1.0, %v1911
    %v1913 = vxor.u32 %v1877, 2147483648
    %v1914 = vxor.u32 %v1878, 2147483648
    %v1915 = vxor.u32 %v1879, 2147483648
    %v1916 = vxor.u32 %v1880, 2147483648
    %v1917 = vmul.f32 %v1913, 1.442695
    %v1918 = vpow.pop %v1917
    %v1919 = vmul.f32 %v1914, 1.442695
    %v1920 = vpow.pop %v1919
    %v1921 = vmul.f32 %v1915, 1.442695
    %v1922 = vpow.pop %v1921
    %v1923 = vmul.f32 %v1916, 1.442695
    %v1924 = vpow.pop %v1923
    %v1925 = vadd.f32 %v1918, 1.0
    %v1926 = vadd.f32 %v1920, 1.0
    %v1927 = vadd.f32 %v1922, 1.0
    %v1928 = vadd.f32 %v1924, 1.0
    %v1929 = vrcp.pop %v1925
    %v1930 = vmul.f32 1.0, %v1929
    %v1931 = vrcp.pop %v1926
    %v1932 = vmul.f32 1.0, %v1931
    %v1933 = vrcp.pop %v1927
    %v1934 = vmul.f32 1.0, %v1933
    %v1935 = vrcp.pop %v1928
    %v1936 = vmul.f32 1.0, %v1935
    %v1937 = vtanh.pop %v1881
    %v1938 = vtanh.pop %v1882
    %v1939 = vtanh.pop %v1883
    %v1940 = vtanh.pop %v1884
    %v1941 = vxor.u32 %v1885, 2147483648
    %v1942 = vxor.u32 %v1886, 2147483648
    %v1943 = vxor.u32 %v1887, 2147483648
    %v1944 = vxor.u32 %v1888, 2147483648
    %v1945 = vmul.f32 %v1941, 1.442695
    %v1946 = vpow.pop %v1945
    %v1947 = vmul.f32 %v1942, 1.442695
    %v1948 = vpow.pop %v1947
    %v1949 = vmul.f32 %v1943, 1.442695
    %v1950 = vpow.pop %v1949
    %v1951 = vmul.f32 %v1944, 1.442695
    %v1952 = vpow.pop %v1951
    %v1953 = vadd.f32 %v1946, 1.0
    %v1954 = vadd.f32 %v1948, 1.0
    %v1955 = vadd.f32 %v1950, 1.0
    %v1956 = vadd.f32 %v1952, 1.0
    %v1957 = vrcp.pop %v1953
    %v1958 = vmul.f32 1.0, %v1957
    %v1959 = vrcp.pop %v1954
    %v1960 = vmul.f32 1.0, %v1959
    %v1961 = vrcp.pop %v1955
    %v1962 = vmul.f32 1.0, %v1961
    %v1963 = vrcp.pop %v1956
    %v1964 = vmul.f32 1.0, %v1963
    %v1965 = vmul.f32 %v1930, %v1746
    %v1966 = vmul.f32 %v1932, %v1747
    %v1967 = vmul.f32 %v1934, %v1748
    %v1968 = vmul.f32 %v1936, %v1749
    %v1969 = vmul.f32 %v1906, %v1937
    %v1970 = vmul.f32 %v1908, %v1938
    %v1971 = vmul.f32 %v1910, %v1939
    %v1972 = vmul.f32 %v1912, %v1940
    %v1973 = vadd.f32 %v1965, %v1969
    %v1974 = vadd.f32 %v1966, %v1970
    %v1975 = vadd.f32 %v1967, %v1971
    %v1976 = vadd.f32 %v1968, %v1972
    %v1977 = vtanh.pop %v1973
    %v1978 = vtanh.pop %v1974
    %v1979 = vtanh.pop %v1975
    %v1980 = vtanh.pop %v1976
    %v1981 = vmul.f32 %v1958, %v1977
    %v1982 = vmul.f32 %v1960, %v1978
    %v1983 = vmul.f32 %v1962, %v1979
    %v1984 = vmul.f32 %v1964, %v1980
    %v1985 = vld [vmem:[%s981] sm:$0xff]
    %v1986 = vld [vmem:[%s981 + $0x8] sm:$0xff]
    %v1987 = vld [vmem:[%s981 + $0x10] sm:$0xff]
    %v1988 = vld [vmem:[%s981 + $0x18] sm:$0xff]
    %v1989 = vld [vmem:[%s981 + $0x20] sm:$0xff]
    %v1990 = vld [vmem:[%s981 + $0x28] sm:$0xff]
    %v1991 = vld [vmem:[%s981 + $0x30] sm:$0xff]
    %v1992 = vld [vmem:[%s981 + $0x38] sm:$0xff]
    %v1993 = vld [vmem:[%s981 + $0x40] sm:$0xff]
    %v1994 = vld [vmem:[%s981 + $0x48] sm:$0xff]
    %v1995 = vld [vmem:[%s981 + $0x50] sm:$0xff]
    %v1996 = vld [vmem:[%s981 + $0x58] sm:$0xff]
    %v1997 = vld [vmem:[%s981 + $0x60] sm:$0xff]
    %v1998 = vld [vmem:[%s981 + $0x68] sm:$0xff]
    %v1999 = vld [vmem:[%s981 + $0x70] sm:$0xff]
    %v2000 = vld [vmem:[%s981 + $0x78] sm:$0xff]
    %v2001 = vpack.c.bf16 %v1982, %v1981
    %v2002 = vpack.c.bf16 %v1984, %v1983
    %2003 = vmatprep.subr.bf16.mxu0 0
    %2004 = vmatpush1.bf16.msra.mxu0 %v2001
    %2005 = vmatprep.subr.bf16.mxu0 0
    %2006 = vmatpush1.bf16.msra.mxu0 %v2002
    %2007 = vmatprep.subr.bf16.mxu0 0
    %2008 = vmatpush1.bf16.msra.mxu0 0
    %2009 = vmatprep.subr.bf16.mxu0 0
    %2010 = vmatpush1.bf16.msra.mxu0 0
    %2011 = vmatprep.subr.bf16.mxu0 0
    %2012 = vmatpush1.bf16.msra.mxu0 0
    %2013 = vmatprep.subr.bf16.mxu0 0
    %2014 = vmatpush1.bf16.msra.mxu0 0
    %2015 = vmatprep.subr.bf16.mxu0 0
    %2016 = vmatpush1.bf16.msra.mxu0 0
    %2017 = vmatprep.subr.bf16.mxu0 0
    %2018 = vmatpush1.bf16.msra.mxu0 0
    %2019 = vmatprep.subr.bf16.mxu0 0
    %2020 = vmatpush1.bf16.msra.mxu0 0
    %2021 = vmatprep.subr.bf16.mxu0 0
    %2022 = vmatpush1.bf16.msra.mxu0 0
    %2023 = vmatprep.subr.bf16.mxu0 0
    %2024 = vmatpush1.bf16.msra.mxu0 0
    %2025 = vmatprep.subr.bf16.mxu0 0
    %2026 = vmatpush1.bf16.msra.mxu0 0
    %2027 = vmatprep.subr.bf16.mxu0 0
    %2028 = vmatpush1.bf16.msra.mxu0 0
    %2029 = vmatprep.subr.bf16.mxu0 0
    %2030 = vmatpush1.bf16.msra.mxu0 0
    %2031 = vmatprep.subr.bf16.mxu0 0
    %2032 = vmatpush1.bf16.msra.mxu0 0
    %2033 = vmatprep.subr.bf16.mxu0 0
    %2034 = vmatpush1.bf16.msra.mxu0 0
    %2035 = vmatprep.mubr.bf16.mxu0 0
    %2036 = vmatmul.mubr.bf16.gmra.mrb[0].mxu0 %v1072
    %v2037 = vpop.f32.mrb[0].mxu0
    %v2038 = vadd.f32 0.0, %v2037
    %v2039 = vpop.f32.mrb[0].mxu0
    %v2040 = vpop.f32.mrb[0].mxu0
    %v2041 = vadd.f32 0.0, %v2040
    %v2042 = vpop.f32.mrb[0].mxu0
    %2043 = vmatprep.mubr.bf16.mxu0 0
    %2044 = vmatmul.mubr.bf16.gmra.mrb[0].mxu0 %v1075
    %v2045 = vpop.f32.mrb[0].mxu0
    %v2046 = vadd.f32 0.0, %v2045
    %v2047 = vpop.f32.mrb[0].mxu0
    %v2048 = vpop.f32.mrb[0].mxu0
    %v2049 = vadd.f32 0.0, %v2048
    %v2050 = vpop.f32.mrb[0].mxu0
    %2051 = vmatprep.mubr.bf16.mxu0 0
    %2052 = vmatmul.mubr.bf16.gmra.mrb[0].mxu0 %v1078
    %v2053 = vpop.f32.mrb[0].mxu0
    %v2054 = vadd.f32 0.0, %v2053
    %v2055 = vpop.f32.mrb[0].mxu0
    %v2056 = vpop.f32.mrb[0].mxu0
    %v2057 = vadd.f32 0.0, %v2056
    %v2058 = vpop.f32.mrb[0].mxu0
    %2059 = vmatprep.mubr.bf16.mxu0 0
    %2060 = vmatmul.mubr.bf16.gmra.mrb[0].mxu0 %v1081
    %v2061 = vpop.f32.mrb[0].mxu0
    %v2062 = vadd.f32 0.0, %v2061
    %v2063 = vpop.f32.mrb[0].mxu0
    %v2064 = vpop.f32.mrb[0].mxu0
    %v2065 = vadd.f32 0.0, %v2064
    %v2066 = vpop.f32.mrb[0].mxu0
    %2067 = vmatprep.mubr.bf16.mxu0 0
    %2068 = vmatmul.mubr.bf16.gmra.mrb[0].mxu0 %v1084
    %v2069 = vpop.f32.mrb[0].mxu0
    %v2070 = vadd.f32 0.0, %v2069
    %v2071 = vpop.f32.mrb[0].mxu0
    %v2072 = vpop.f32.mrb[0].mxu0
    %v2073 = vadd.f32 0.0, %v2072
    %v2074 = vpop.f32.mrb[0].mxu0
    %2075 = vmatprep.mubr.bf16.mxu0 0
    %2076 = vmatmul.mubr.bf16.gmra.mrb[0].mxu0 %v1087
    %v2077 = vpop.f32.mrb[0].mxu0
    %v2078 = vadd.f32 0.0, %v2077
    %v2079 = vpop.f32.mrb[0].mxu0
    %v2080 = vpop.f32.mrb[0].mxu0
    %v2081 = vadd.f32 0.0, %v2080
    %v2082 = vpop.f32.mrb[0].mxu0
    %2083 = vmatprep.mubr.bf16.mxu0 0
    %2084 = vmatmul.mubr.bf16.gmra.mrb[0].mxu0 %v1090
    %v2085 = vpop.f32.mrb[0].mxu0
    %v2086 = vadd.f32 0.0, %v2085
    %v2087 = vpop.f32.mrb[0].mxu0
    %v2088 = vpop.f32.mrb[0].mxu0
    %v2089 = vadd.f32 0.0, %v2088
    %v2090 = vpop.f32.mrb[0].mxu0
    %2091 = vmatprep.mubr.bf16.mxu0 0
    %2092 = vmatmul.mubr.bf16.gmra.mrb[0].mxu0 %v1093
    %v2093 = vpop.f32.mrb[0].mxu0
    %v2094 = vadd.f32 0.0, %v2093
    %v2095 = vpop.f32.mrb[0].mxu0
    %v2096 = vpop.f32.mrb[0].mxu0
    %v2097 = vadd.f32 0.0, %v2096
    %v2098 = vpop.f32.mrb[0].mxu0
    %2099 = vdwg.mxu0
    %v2100 = vadd.f32 %v1985, %v2038
    %v2101 = vadd.f32 %v1986, %v2041
    %v2102 = vadd.f32 %v1987, %v2046
    %v2103 = vadd.f32 %v1988, %v2049
    %v2104 = vadd.f32 %v1989, %v2054
    %v2105 = vadd.f32 %v1990, %v2057
    %v2106 = vadd.f32 %v1991, %v2062
    %v2107 = vadd.f32 %v1992, %v2065
    %v2108 = vadd.f32 %v1993, %v2070
    %v2109 = vadd.f32 %v1994, %v2073
    %v2110 = vadd.f32 %v1995, %v2078
    %v2111 = vadd.f32 %v1996, %v2081
    %v2112 = vadd.f32 %v1997, %v2086
    %v2113 = vadd.f32 %v1998, %v2089
    %v2114 = vadd.f32 %v1999, %v2094
    %v2115 = vadd.f32 %v2000, %v2097
    %v2116 = vxor.u32 %v2100, 2147483648
    %v2117 = vxor.u32 %v2101, 2147483648
    %v2118 = vxor.u32 %v2102, 2147483648
    %v2119 = vxor.u32 %v2103, 2147483648
    %v2120 = vmul.f32 %v2116, 1.442695
    %v2121 = vpow.pop %v2120
    %v2122 = vmul.f32 %v2117, 1.442695
    %v2123 = vpow.pop %v2122
    %v2124 = vmul.f32 %v2118, 1.442695
    %v2125 = vpow.pop %v2124
    %v2126 = vmul.f32 %v2119, 1.442695
    %v2127 = vpow.pop %v2126
    %v2128 = vadd.f32 %v2121, 1.0
    %v2129 = vadd.f32 %v2123, 1.0
    %v2130 = vadd.f32 %v2125, 1.0
    %v2131 = vadd.f32 %v2127, 1.0
    %v2132 = vrcp.pop %v2128
    %v2133 = vmul.f32 1.0, %v2132
    %v2134 = vrcp.pop %v2129
    %v2135 = vmul.f32 1.0, %v2134
    %v2136 = vrcp.pop %v2130
    %v2137 = vmul.f32 1.0, %v2136
    %v2138 = vrcp.pop %v2131
    %v2139 = vmul.f32 1.0, %v2138
    %v2140 = vxor.u32 %v2104, 2147483648
    %v2141 = vxor.u32 %v2105, 2147483648
    %v2142 = vxor.u32 %v2106, 2147483648
    %v2143 = vxor.u32 %v2107, 2147483648
    %v2144 = vmul.f32 %v2140, 1.442695
    %v2145 = vpow.pop %v2144
    %v2146 = vmul.f32 %v2141, 1.442695
    %v2147 = vpow.pop %v2146
    %v2148 = vmul.f32 %v2142, 1.442695
    %v2149 = vpow.pop %v2148
    %v2150 = vmul.f32 %v2143, 1.442695
    %v2151 = vpow.pop %v2150
    %v2152 = vadd.f32 %v2145, 1.0
    %v2153 = vadd.f32 %v2147, 1.0
    %v2154 = vadd.f32 %v2149, 1.0
    %v2155 = vadd.f32 %v2151, 1.0
    %v2156 = vrcp.pop %v2152
    %v2157 = vmul.f32 1.0, %v2156
    %v2158 = vrcp.pop %v2153
    %v2159 = vmul.f32 1.0, %v2158
    %v2160 = vrcp.pop %v2154
    %v2161 = vmul.f32 1.0, %v2160
    %v2162 = vrcp.pop %v2155
    %v2163 = vmul.f32 1.0, %v2162
    %v2164 = vtanh.pop %v2108
    %v2165 = vtanh.pop %v2109
    %v2166 = vtanh.pop %v2110
    %v2167 = vtanh.pop %v2111
    %v2168 = vxor.u32 %v2112, 2147483648
    %v2169 = vxor.u32 %v2113, 2147483648
    %v2170 = vxor.u32 %v2114, 2147483648
    %v2171 = vxor.u32 %v2115, 2147483648
    %v2172 = vmul.f32 %v2168, 1.442695
    %v2173 = vpow.pop %v2172
    %v2174 = vmul.f32 %v2169, 1.442695
    %v2175 = vpow.pop %v2174
    %v2176 = vmul.f32 %v2170, 1.442695
    %v2177 = vpow.pop %v2176
    %v2178 = vmul.f32 %v2171, 1.442695
    %v2179 = vpow.pop %v2178
    %v2180 = vadd.f32 %v2173, 1.0
    %v2181 = vadd.f32 %v2175, 1.0
    %v2182 = vadd.f32 %v2177, 1.0
    %v2183 = vadd.f32 %v2179, 1.0
    %v2184 = vrcp.pop %v2180
    %v2185 = vmul.f32 1.0, %v2184
    %v2186 = vrcp.pop %v2181
    %v2187 = vmul.f32 1.0, %v2186
    %v2188 = vrcp.pop %v2182
    %v2189 = vmul.f32 1.0, %v2188
    %v2190 = vrcp.pop %v2183
    %v2191 = vmul.f32 1.0, %v2190
    %v2192 = vmul.f32 %v2157, %v1973
    %v2193 = vmul.f32 %v2159, %v1974
    %v2194 = vmul.f32 %v2161, %v1975
    %v2195 = vmul.f32 %v2163, %v1976
    %v2196 = vmul.f32 %v2133, %v2164
    %v2197 = vmul.f32 %v2135, %v2165
    %v2198 = vmul.f32 %v2137, %v2166
    %v2199 = vmul.f32 %v2139, %v2167
    %v2200 = vadd.f32 %v2192, %v2196
    %v2201 = vadd.f32 %v2193, %v2197
    %v2202 = vadd.f32 %v2194, %v2198
    %v2203 = vadd.f32 %v2195, %v2199
    %v2204 = vtanh.pop %v2200
    %v2205 = vtanh.pop %v2201
    %v2206 = vtanh.pop %v2202
    %v2207 = vtanh.pop %v2203
    %v2208 = vmul.f32 %v2185, %v2204
    %v2209 = vmul.f32 %v2187, %v2205
    %v2210 = vmul.f32 %v2189, %v2206
    %v2211 = vmul.f32 %v2191, %v2207
    %v2212 = vld [vmem:[%s3] sm:$0xf]
    %v2213 = vld [vmem:[%s3 + $0x4] sm:$0xf]
    %v2214 = vld [vmem:[%s3 + $0x8] sm:$0xf]
    %v2215 = vld [vmem:[%s3 + $0xc] sm:$0xf]
    %v2216 = vunpack.c.l.bf16 %v2212
    %v2217 = vunpack.c.l.bf16 %v2213
    %v2218 = vunpack.c.l.bf16 %v2214
    %v2219 = vunpack.c.l.bf16 %v2215
    %v2220 = vadd.f32 %v2216, %v2208
    %v2221 = vadd.f32 %v2217, %v2209
    %v2222 = vadd.f32 %v2218, %v2210
    %v2223 = vadd.f32 %v2219, %v2211
    %v2224 = vld [vmem:[%s4] sm:$0xf]
    %v2225 = vld [vmem:[%s4 + $0x4] sm:$0xf]
    %v2226 = vld [vmem:[%s4 + $0x8] sm:$0xf]
    %v2227 = vld [vmem:[%s4 + $0xc] sm:$0xf]
    %v2228 = vunpack.c.l.bf16 %v2224
    %v2229 = vunpack.c.l.bf16 %v2225
    %v2230 = vunpack.c.l.bf16 %v2226
    %v2231 = vunpack.c.l.bf16 %v2227
    %v2232 = vsub.f32 %v2220, %v2228
    %v2233 = vsub.f32 %v2221, %v2229
    %v2234 = vsub.f32 %v2222, %v2230
    %v2235 = vsub.f32 %v2223, %v2231
    %v2236 = vand.u32 2147483647, %v2232
    %v2237 = vand.u32 2147483647, %v2233
    %v2238 = vand.u32 2147483647, %v2234
    %v2239 = vand.u32 2147483647, %v2235
    %v2240 = vadd.f32 %v2236, %v2237
    %v2241 = vadd.f32 %v2240, %v2238
    %v2242 = vadd.f32 %v2241, %v2239
    %v2243 = vrot.slane %v2242, 4
    %v2244 = vadd.f32 %v2242, %v2243
    %v2245 = vrot.slane %v2244, 2
    %v2246 = vadd.f32 %v2244, %v2245
    %v2247 = vrot.slane %v2246, 1
    %v2248 = vadd.f32 %v2246, %v2247
    %v2249 = vsub.f32 0.0, %v2248
    %2250 = vst [vmem:[#allocation3] sm:$0x1] %v2249
    // Predicated region
    $region22: #{tpu_custom_call.1} parent=1 // pred_check
      _
    $region23: #{tpu_custom_call.1} parent=1 // pred_check_branch
      %2252 = sbr.rel (0) target = $region25
    $region24: #{tpu_custom_call.1} parent=1 // pred_region
      %s2254 = ssub.s32 16, 16
      %2255 = vsyncadd [#allocation4], %s2254
      %s2257 = sshll.u32 [#allocation3], 4
      %s2258 = int_to_ptr.vmem [resolvable:$true] %s2257
      %2260 = dma.vmem_to_hbm [thread:$0]  %s2258, 16, %s5, [#allocation4]
    $region25: #{tpu_custom_call.1} parent=1 // pred_fallthru
      _
    // Predicated region
    $region26: #{tpu_custom_call.1} parent=1 // pred_check
      _
    $region27: #{tpu_custom_call.1} parent=1 // pred_check_branch
      %2262 = sbr.rel (0) target = $region29
    $region28: #{tpu_custom_call.1} parent=1 // pred_region
      %2263 = dma.done [#allocation4], 16
    $region29: #{tpu_custom_call.1} parent=1 // pred_fallthru
      _
    %2264 = vsyncpa [#allocation4], 1

</llo_original>
